<compile_context>
chip_gen: v7x
topology: tpu7x:2x2x1
jax: 0.10.0
libtpu: 0.0.40
codegen_flags: <defaults>
</compile_context>

<pallas_src>
import functools
import math

import jax
import jax.numpy as jnp
import numpy as np
from jax import lax
from jax.experimental import pallas as pl
from jax.experimental.pallas import tpu as pltpu

_BN_EPS = 1e-5


# ----------------------------------------------------------------------------
# Fused Pallas kernel
# ----------------------------------------------------------------------------

def _fused_ir_kernel(*refs, stride, h, w, oh, ow, expand, use_res, apron):
    it = iter(refs)
    x_ref = next(it)                       # (1, inp, H*W) channel-first f32
    if expand:
        we_ref = next(it)                  # (hidden, inp) bf16, BN folded
        b1_ref = next(it)                  # (hidden, 1)   f32
    wd_ref = next(it)                      # (hidden, 9)   f32, BN folded
    b2_ref = next(it)                      # (hidden, 1)   f32
    wp_ref = next(it)                      # (oup, hidden) bf16, BN folded
    b3_ref = next(it)                      # (oup, 1)      f32
    o_ref = next(it)                       # (1, oup, OH*OW) channel-first
    ext_ref = next(it)                     # VMEM (hidden, H*W + 2*apron) f32

    npix = h * w
    hid = ext_ref.shape[0]

    x_cf = x_ref[0]                        # (inp, npix) f32, pixels on lanes

    # ---- stage 1: 1x1 expand conv (+ folded BN) + ReLU6 (bf16 MXU) ----------
    if expand:
        e = jnp.dot(we_ref[...], x_cf.astype(jnp.bfloat16),
                    preferred_element_type=jnp.float32)
        e = jnp.clip(e + b1_ref[...], 0.0, 6.0)
    else:
        e = x_cf

    # Zero-aproned flat activation: apron zeros model the depthwise's spatial
    # zero padding; all stores below are lane-aligned (apron % 128 == 0).
    ext_ref[:, :apron] = jnp.zeros((hid, apron), jnp.float32)
    ext_ref[:, apron + npix:] = jnp.zeros((hid, apron), jnp.float32)
    ext_ref[:, apron:apron + npix] = e

    # ---- stage 2: 3x3 depthwise conv (+ folded BN) + ReLU6 (f32 VPU) --------
    # Tap (kh, kw) of the padded image is a constant flat shift (kh-1)*W+(kw-1);
    # column masks kill the row-wrap bleed of the flat layout (the zero apron
    # already handles the top/bottom rows).
    col = lax.broadcasted_iota(jnp.int32, (1, npix), 1) % w
    mask_l = (col > 0).astype(jnp.float32)        # valid out cols for dw = -1
    mask_r = (col < (w - 1)).astype(jnp.float32)  # valid out cols for dw = +1

    wd = wd_ref[...]                       # (hid, 9)
    acc = jnp.zeros((hid, npix), jnp.float32)
    for kh in range(3):
        for kw in range(3):
            off = (kh - 1) * w + (kw - 1)
            tap = ext_ref[:, apron + off:apron + off + npix]   # (hid, npix)
            k = kh * 3 + kw
            contrib = tap * wd[:, k:k + 1]
            if kw == 0:
                contrib = contrib * mask_l
            elif kw == 2:
                contrib = contrib * mask_r
            acc = acc + contrib
    d = jnp.clip(acc + b2_ref[...], 0.0, 6.0)

    # ---- stride 2: subsample via a 0/1 selection matmul on the MXU ----------
    if stride == 2:
        nout = oh * ow
        p_idx = lax.broadcasted_iota(jnp.int32, (npix, nout), 0)
        q_idx = lax.broadcasted_iota(jnp.int32, (npix, nout), 1)
        src = 2 * (q_idx // ow) * w + 2 * (q_idx % ow)
        sel = (p_idx == src).astype(jnp.float32)
        d = jnp.dot(d, sel, preferred_element_type=jnp.float32)

    # ---- stage 3: 1x1 project conv (+ folded BN) (+ residual) ---------------
    out = jnp.dot(wp_ref[...], d.astype(jnp.bfloat16),
                  preferred_element_type=jnp.float32)
    out = out + b3_ref[...]
    if use_res:
        out = out + x_cf                   # reuse the resident input tile
    o_ref[0] = out.astype(o_ref.dtype)


# ----------------------------------------------------------------------------
# BN folding / parameter init (glue)
# ----------------------------------------------------------------------------

def _fold_bn(gamma, beta, mean, var):
    scale = gamma / jnp.sqrt(var + _BN_EPS)
    bias = beta - mean * scale
    return scale, bias


def _fold_params(params, *, expand, cast_matmul_weights_to_bf16):
    """Fold eval-mode BN scales into the conv weights; keep biases separate."""
    mm_dtype = jnp.bfloat16 if cast_matmul_weights_to_bf16 else jnp.float32
    folded = {}
    if expand:
        s1, b1 = _fold_bn(*params["bn1"])
        folded["we"] = (params["w_expand"] * s1[None, :]).astype(mm_dtype)
        folded["b1"] = b1.astype(jnp.float32)
    s2, b2 = _fold_bn(*params["bn2"])
    folded["wd"] = (params["w_dw"] * s2[None, None, :]).astype(jnp.float32)
    folded["b2"] = b2.astype(jnp.float32)
    s3, b3 = _fold_bn(*params["bn3"])
    folded["wp"] = (params["w_proj"] * s3[None, :]).astype(mm_dtype)
    folded["b3"] = b3.astype(jnp.float32)
    return folded


def _init_bn(c, base):
    gamma = 1.0 + 0.01 * jnp.arange(c, dtype=jnp.float32) + base
    beta = 0.02 * jnp.arange(c, dtype=jnp.float32) - base
    mean = 0.05 * jnp.sin(jnp.arange(c, dtype=jnp.float32) + base)
    var = 1.0 + 0.1 * jnp.cos(jnp.arange(c, dtype=jnp.float32) + base) ** 2
    return gamma, beta, mean, var


def init_inverted_residual_params(key, inp, oup, expand_ratio):
    hidden = int(round(inp * expand_ratio))
    k1, k2, k3 = jax.random.split(key, 3)
    params = {"hidden": hidden}
    if expand_ratio != 1:
        params["w_expand"] = (jax.random.normal(k1, (inp, hidden), jnp.float32)
                              * (1.0 / math.sqrt(inp)))
        params["bn1"] = _init_bn(hidden, 0.1)
    params["w_dw"] = jax.random.normal(k2, (3, 3, hidden), jnp.float32) * 0.2
    params["bn2"] = _init_bn(hidden, 0.2)
    params["w_proj"] = (jax.random.normal(k3, (hidden, oup), jnp.float32)
                        * (1.0 / math.sqrt(hidden)))
    params["bn3"] = _init_bn(oup, 0.3)
    return params


# ----------------------------------------------------------------------------
# Module forward (single fused pallas_call)
# ----------------------------------------------------------------------------

def inverted_residual_forward(x_nchw, params, *, inp, oup, stride, expand_ratio):
    assert stride in (1, 2)
    n, c, h, w = x_nchw.shape
    assert c == inp
    expand = expand_ratio != 1
    use_res = (stride == 1) and (inp == oup)
    hidden = int(round(inp * expand_ratio))
    oh = (h + 2 - 3) // stride + 1
    ow = (w + 2 - 3) // stride + 1
    npix = h * w
    apron = ((w + 1 + 127) // 128) * 128      # lane-aligned zero apron

    f = _fold_params(params, expand=expand, cast_matmul_weights_to_bf16=True)

    x_flat = x_nchw.reshape(n, inp, npix)     # NCHW, H*W flattened onto lanes

    inputs = [x_flat]
    in_specs = [pl.BlockSpec((1, inp, npix), lambda b: (b, 0, 0))]
    if expand:
        inputs += [jnp.transpose(f["we"]), f["b1"].reshape(hidden, 1)]
        in_specs += [pl.BlockSpec((hidden, inp), lambda b: (0, 0)),
                     pl.BlockSpec((hidden, 1), lambda b: (0, 0))]
    inputs += [jnp.transpose(f["wd"].reshape(9, hidden)),
               f["b2"].reshape(hidden, 1),
               jnp.transpose(f["wp"]),
               f["b3"].reshape(oup, 1)]
    in_specs += [pl.BlockSpec((hidden, 9), lambda b: (0, 0)),
                 pl.BlockSpec((hidden, 1), lambda b: (0, 0)),
                 pl.BlockSpec((oup, hidden), lambda b: (0, 0)),
                 pl.BlockSpec((oup, 1), lambda b: (0, 0))]

    kernel = functools.partial(_fused_ir_kernel, stride=stride, h=h, w=w,
                               oh=oh, ow=ow, expand=expand, use_res=use_res,
                               apron=apron)

    # TODO(synk): for production spatial sizes (e.g. 112x112) also tile the grid
    # over output rows (2-row halo) so both v7x TensorCores get parallel work
    # and per-step tiles stay pipelineable; a per-image grid suffices here.
    out = pl.pallas_call(
        kernel,
        out_shape=jax.ShapeDtypeStruct((n, oup, oh * ow), x_nchw.dtype),
        grid_spec=pltpu.PrefetchScalarGridSpec(
            num_scalar_prefetch=0,
            grid=(n,),
            in_specs=in_specs,
            out_specs=pl.BlockSpec((1, oup, oh * ow), lambda b: (b, 0, 0)),
            scratch_shapes=[pltpu.VMEM((hidden, npix + 2 * apron),
                                       jnp.float32)]),
        compiler_params=pltpu.CompilerParams(
            dimension_semantics=("parallel",)),
    )(*inputs)

    return out.reshape(n, oup, oh, ow)        # already NCHW: no transpose pass


# ----------------------------------------------------------------------------
# Pure-JAX reference (correctness check only)
# ----------------------------------------------------------------------------

def _reference_forward(x_nchw, params, *, inp, oup, stride, expand_ratio,
                       mirror_kernel_precision):
    """With mirror_kernel_precision=True, apply the same bf16 rounding to the
    matmul weights/activations as the kernel does (f32 accumulation)."""
    expand = expand_ratio != 1
    use_res = (stride == 1) and (inp == oup)
    f = _fold_params(params, expand=expand,
                     cast_matmul_weights_to_bf16=mirror_kernel_precision)
    prec = jax.lax.Precision.HIGHEST

    def q(a):
        if mirror_kernel_precision:
            return a.astype(jnp.bfloat16).astype(jnp.float32)
        return a

    x = jnp.transpose(x_nchw, (0, 2, 3, 1)).astype(jnp.float32)   # NHWC
    hcur = x
    if expand:
        hcur = jnp.einsum("nhwc,cd->nhwd", q(hcur),
                          f["we"].astype(jnp.float32), precision=prec) + f["b1"]
        hcur = jnp.clip(hcur, 0.0, 6.0)
    hid = hcur.shape[-1]
    dw = f["wd"].reshape(3, 3, 1, hid)
    hcur = jax.lax.conv_general_dilated(
        hcur, dw, window_strides=(stride, stride), padding=((1, 1), (1, 1)),
        dimension_numbers=("NHWC", "HWIO", "NHWC"),
        feature_group_count=hid, precision=prec)
    hcur = jnp.clip(hcur + f["b2"], 0.0, 6.0)
    out = jnp.einsum("nhwc,cd->nhwd", q(hcur),
                     f["wp"].astype(jnp.float32), precision=prec) + f["b3"]
    if use_res:
        out = out + x
    return jnp.transpose(out, (0, 3, 1, 2))


# ----------------------------------------------------------------------------
# Main
# ----------------------------------------------------------------------------

if __name__ == "__main__":
    N, H, W = 2, 16, 16
    cases = [
        # (inp, oup, stride, expand_ratio)
        (8, 8, 1, 4),    # expand (hidden=32) + residual
        (8, 8, 1, 1),    # expand_ratio=1 path + residual
        (8, 16, 2, 4),   # expand, stride 2, no residual
    ]

    root = jax.random.PRNGKey(0)
    for idx, (INP, OUP, STRIDE, EXPAND) in enumerate(cases):
        kx, kp = jax.random.split(jax.random.fold_in(root, idx))
        x = jax.random.normal(kx, (N, INP, H, W), jnp.float32)  # NCHW like PyTorch
        params = init_inverted_residual_params(kp, INP, OUP, EXPAND)

        out = jax.block_until_ready(inverted_residual_forward(
            x, params, inp=INP, oup=OUP, stride=STRIDE, expand_ratio=EXPAND))

        # Strict check vs. a reference mirroring the kernel's bf16 matmul I/O.
        ref_q = jax.block_until_ready(_reference_forward(
            x, params, inp=INP, oup=OUP, stride=STRIDE, expand_ratio=EXPAND,
            mirror_kernel_precision=True))
        np.testing.assert_allclose(np.asarray(out), np.asarray(ref_q),
                                   rtol=2e-2, atol=2e-2)

        # Loose sanity check vs. pure-f32 module semantics (difference bounded
        # by the bf16 matmul I/O quantization).
        ref_f32 = jax.block_until_ready(_reference_forward(
            x, params, inp=INP, oup=OUP, stride=STRIDE, expand_ratio=EXPAND,
            mirror_kernel_precision=False))
        np.testing.assert_allclose(np.asarray(out), np.asarray(ref_f32),
                                   rtol=2e-1, atol=2e-1)

    print("KERNEL_OK")
</pallas_src>

<mosaic_0001>
module attributes {stable_mosaic.version = 11 : i64} {
  func.func @_fused_ir_kernel(%arg0: i32, %arg1: memref<1x8x256xf32, #tpu.memory_space<vmem>>, %arg2: memref<32x8xbf16, #tpu.memory_space<vmem>>, %arg3: memref<32x1xf32, #tpu.memory_space<vmem>>, %arg4: memref<32x9xf32, #tpu.memory_space<vmem>>, %arg5: memref<32x1xf32, #tpu.memory_space<vmem>>, %arg6: memref<8x32xbf16, #tpu.memory_space<vmem>>, %arg7: memref<8x1xf32, #tpu.memory_space<vmem>>, %arg8: memref<1x8x256xf32, #tpu.memory_space<vmem>>, %arg9: memref<32x512xf32, #tpu.memory_space<vmem>>) attributes {dimension_semantics = [#tpu.dimension_semantics<parallel>], iteration_bounds = array<i64: 2>, scalar_prefetch = 0 : i64, scratch_operands = 1 : i64, tpu.core_type = #tpu.core_type<tc>, window_params = [{transform_indices = @transform_0, window_bounds = array<i64: 1, 8, 256>}, {pipeline_mode = #tpu.pipeline_mode<synchronous>, transform_indices = @transform_1, window_bounds = array<i64: 32, 8>}, {pipeline_mode = #tpu.pipeline_mode<synchronous>, transform_indices = @transform_2, window_bounds = array<i64: 32, 1>}, {pipeline_mode = #tpu.pipeline_mode<synchronous>, transform_indices = @transform_3, window_bounds = array<i64: 32, 9>}, {pipeline_mode = #tpu.pipeline_mode<synchronous>, transform_indices = @transform_4, window_bounds = array<i64: 32, 1>}, {pipeline_mode = #tpu.pipeline_mode<synchronous>, transform_indices = @transform_5, window_bounds = array<i64: 8, 32>}, {pipeline_mode = #tpu.pipeline_mode<synchronous>, transform_indices = @transform_6, window_bounds = array<i64: 8, 1>}, {transform_indices = @transform_7, window_bounds = array<i64: 1, 8, 256>}]} {
    %c0 = arith.constant 0 : index
    %c0_0 = arith.constant 0 : index
    %c0_1 = arith.constant 0 : index
    %0 = vector.load %arg1[%c0, %c0_0, %c0_1] : memref<1x8x256xf32, #tpu.memory_space<vmem>>, vector<1x8x256xf32>
    %1 = vector.shape_cast %0 : vector<1x8x256xf32> to vector<8x256xf32>
    %c0_2 = arith.constant 0 : index
    %c0_3 = arith.constant 0 : index
    %2 = vector.load %arg2[%c0_2, %c0_3] : memref<32x8xbf16, #tpu.memory_space<vmem>>, vector<32x8xbf16>
    %3 = arith.truncf %1 : vector<8x256xf32> to vector<8x256xbf16>
    %cst = arith.constant dense<0.000000e+00> : vector<32x256xf32>
    %4 = tpu.matmul %2, %3, %cst {dimension_numbers = #tpu.dot_dimension_numbers<[1], [0], [0], [1], [0, 0, 1, 1], [], []>} : vector<32x8xbf16>, vector<8x256xbf16>, vector<32x256xf32> -> vector<32x256xf32>
    %c0_4 = arith.constant 0 : index
    %c0_5 = arith.constant 0 : index
    %5 = vector.load %arg3[%c0_4, %c0_5] : memref<32x1xf32, #tpu.memory_space<vmem>>, vector<32x1xf32>
    %6 = vector.broadcast %5 : vector<32x1xf32> to vector<32x256xf32>
    %7 = arith.addf %4, %6 : vector<32x256xf32>
    %cst_6 = arith.constant 0.000000e+00 : f32
    %cst_7 = arith.constant 6.000000e+00 : f32
    %8 = vector.broadcast %cst_6 : f32 to vector<32x256xf32>
    %9 = arith.maximumf %8, %7 : vector<32x256xf32>
    %10 = vector.broadcast %cst_7 : f32 to vector<32x256xf32>
    %11 = arith.minimumf %10, %9 : vector<32x256xf32>
    %cst_8 = arith.constant 0.000000e+00 : f32
    %12 = vector.broadcast %cst_8 : f32 to vector<32x128xf32>
    %c0_9 = arith.constant 0 : index
    %c0_10 = arith.constant 0 : index
    %13 = vector.load %arg9[%c0_9, %c0_10] : memref<32x512xf32, #tpu.memory_space<vmem>>, vector<32x128xf32>
    tpu.vector_store %arg9[%c0_9, %c0_10], %12 {strides = array<i32>} : memref<32x512xf32, #tpu.memory_space<vmem>>, vector<32x128xf32>,
    %cst_11 = arith.constant 0.000000e+00 : f32
    %14 = vector.broadcast %cst_11 : f32 to vector<32x128xf32>
    %c0_12 = arith.constant 0 : index
    %c384 = arith.constant 384 : index
    %15 = vector.load %arg9[%c0_12, %c384] : memref<32x512xf32, #tpu.memory_space<vmem>>, vector<32x128xf32>
    tpu.vector_store %arg9[%c0_12, %c384], %14 {strides = array<i32>} : memref<32x512xf32, #tpu.memory_space<vmem>>, vector<32x128xf32>,
    %c0_13 = arith.constant 0 : index
    %c128 = arith.constant 128 : index
    %16 = vector.load %arg9[%c0_13, %c128] : memref<32x512xf32, #tpu.memory_space<vmem>>, vector<32x256xf32>
    tpu.vector_store %arg9[%c0_13, %c128], %11 {strides = array<i32>} : memref<32x512xf32, #tpu.memory_space<vmem>>, vector<32x256xf32>,
    %17 = tpu.iota {dimensions = array<i32: 1>} : vector<1x256xi32>
    %c16_i32 = arith.constant 16 : i32
    %c0_i32 = arith.constant 0 : i32
    %18 = arith.cmpi eq, %c16_i32, %c0_i32 : i32
    %c1_i32 = arith.constant 1 : i32
    %19 = arith.select %18, %c1_i32, %c16_i32 : i32
    %20 = vector.broadcast %19 : i32 to vector<1x256xi32>
    %21 = arith.remsi %17, %20 : vector<1x256xi32>
    %c0_i32_14 = arith.constant 0 : i32
    %22 = vector.broadcast %c0_i32_14 : i32 to vector<1x256xi32>
    %23 = arith.cmpi ne, %21, %22 : vector<1x256xi32>
    %c0_i32_15 = arith.constant 0 : i32
    %24 = vector.broadcast %c0_i32_15 : i32 to vector<1x256xi32>
    %25 = arith.cmpi slt, %21, %24 : vector<1x256xi32>
    %c0_i32_16 = arith.constant 0 : i32
    %26 = arith.cmpi slt, %19, %c0_i32_16 : i32
    %27 = vector.broadcast %26 : i1 to vector<1x256xi1>
    %28 = vector.broadcast %27 : vector<1x256xi1> to vector<1x256xi1>
    %29 = arith.xori %25, %28 : vector<1x256xi1>
    %30 = arith.andi %29, %23 : vector<1x256xi1>
    %31 = vector.broadcast %19 : i32 to vector<1x256xi32>
    %32 = arith.addi %21, %31 : vector<1x256xi32>
    %33 = arith.select %30, %32, %21 : vector<1x256xi1>, vector<1x256xi32>
    %c0_i32_17 = arith.constant 0 : i32
    %34 = vector.broadcast %c0_i32_17 : i32 to vector<1x256xi32>
    %35 = arith.cmpi sgt, %33, %34 : vector<1x256xi32>
    %36 = arith.extui %35 : vector<1x256xi1> to vector<1x256xi32>
    %37 = arith.sitofp %36 : vector<1x256xi32> to vector<1x256xf32>
    %c15_i32 = arith.constant 15 : i32
    %38 = vector.broadcast %c15_i32 : i32 to vector<1x256xi32>
    %39 = arith.cmpi slt, %33, %38 : vector<1x256xi32>
    %40 = arith.extui %39 : vector<1x256xi1> to vector<1x256xi32>
    %41 = arith.sitofp %40 : vector<1x256xi32> to vector<1x256xf32>
    %c0_18 = arith.constant 0 : index
    %c0_19 = arith.constant 0 : index
    %42 = vector.load %arg4[%c0_18, %c0_19] : memref<32x9xf32, #tpu.memory_space<vmem>>, vector<32x9xf32>
    %cst_20 = arith.constant 0.000000e+00 : f32
    %43 = vector.broadcast %cst_20 : f32 to vector<32x256xf32>
    %c0_21 = arith.constant 0 : index
    %c111 = arith.constant 111 : index
    %44 = vector.load %arg9[%c0_21, %c111] : memref<32x512xf32, #tpu.memory_space<vmem>>, vector<32x256xf32>
    %45 = vector.extract_strided_slice %42 {offsets = [0, 0], sizes = [32, 1], strides = [1, 1]} : vector<32x9xf32> to vector<32x1xf32>
    %46 = vector.broadcast %45 : vector<32x1xf32> to vector<32x256xf32>
    %47 = arith.mulf %44, %46 : vector<32x256xf32>
    %48 = vector.broadcast %37 : vector<1x256xf32> to vector<32x256xf32>
    %49 = arith.mulf %47, %48 : vector<32x256xf32>
    %50 = arith.addf %43, %49 : vector<32x256xf32>
    %c0_22 = arith.constant 0 : index
    %c112 = arith.constant 112 : index
    %51 = vector.load %arg9[%c0_22, %c112] : memref<32x512xf32, #tpu.memory_space<vmem>>, vector<32x256xf32>
    %52 = vector.extract_strided_slice %42 {offsets = [0, 1], sizes = [32, 1], strides = [1, 1]} : vector<32x9xf32> to vector<32x1xf32>
    %53 = vector.broadcast %52 : vector<32x1xf32> to vector<32x256xf32>
    %54 = arith.mulf %51, %53 : vector<32x256xf32>
    %55 = arith.addf %50, %54 : vector<32x256xf32>
    %c0_23 = arith.constant 0 : index
    %c113 = arith.constant 113 : index
    %56 = vector.load %arg9[%c0_23, %c113] : memref<32x512xf32, #tpu.memory_space<vmem>>, vector<32x256xf32>
    %57 = vector.extract_strided_slice %42 {offsets = [0, 2], sizes = [32, 1], strides = [1, 1]} : vector<32x9xf32> to vector<32x1xf32>
    %58 = vector.broadcast %57 : vector<32x1xf32> to vector<32x256xf32>
    %59 = arith.mulf %56, %58 : vector<32x256xf32>
    %60 = vector.broadcast %41 : vector<1x256xf32> to vector<32x256xf32>
    %61 = arith.mulf %59, %60 : vector<32x256xf32>
    %62 = arith.addf %55, %61 : vector<32x256xf32>
    %c0_24 = arith.constant 0 : index
    %c127 = arith.constant 127 : index
    %63 = vector.load %arg9[%c0_24, %c127] : memref<32x512xf32, #tpu.memory_space<vmem>>, vector<32x256xf32>
    %64 = vector.extract_strided_slice %42 {offsets = [0, 3], sizes = [32, 1], strides = [1, 1]} : vector<32x9xf32> to vector<32x1xf32>
    %65 = vector.broadcast %64 : vector<32x1xf32> to vector<32x256xf32>
    %66 = arith.mulf %63, %65 : vector<32x256xf32>
    %67 = vector.broadcast %37 : vector<1x256xf32> to vector<32x256xf32>
    %68 = arith.mulf %66, %67 : vector<32x256xf32>
    %69 = arith.addf %62, %68 : vector<32x256xf32>
    %c0_25 = arith.constant 0 : index
    %c128_26 = arith.constant 128 : index
    %70 = vector.load %arg9[%c0_25, %c128_26] : memref<32x512xf32, #tpu.memory_space<vmem>>, vector<32x256xf32>
    %71 = vector.extract_strided_slice %42 {offsets = [0, 4], sizes = [32, 1], strides = [1, 1]} : vector<32x9xf32> to vector<32x1xf32>
    %72 = vector.broadcast %71 : vector<32x1xf32> to vector<32x256xf32>
    %73 = arith.mulf %70, %72 : vector<32x256xf32>
    %74 = arith.addf %69, %73 : vector<32x256xf32>
    %c0_27 = arith.constant 0 : index
    %c129 = arith.constant 129 : index
    %75 = vector.load %arg9[%c0_27, %c129] : memref<32x512xf32, #tpu.memory_space<vmem>>, vector<32x256xf32>
    %76 = vector.extract_strided_slice %42 {offsets = [0, 5], sizes = [32, 1], strides = [1, 1]} : vector<32x9xf32> to vector<32x1xf32>
    %77 = vector.broadcast %76 : vector<32x1xf32> to vector<32x256xf32>
    %78 = arith.mulf %75, %77 : vector<32x256xf32>
    %79 = vector.broadcast %41 : vector<1x256xf32> to vector<32x256xf32>
    %80 = arith.mulf %78, %79 : vector<32x256xf32>
    %81 = arith.addf %74, %80 : vector<32x256xf32>
    %c0_28 = arith.constant 0 : index
    %c143 = arith.constant 143 : index
    %82 = vector.load %arg9[%c0_28, %c143] : memref<32x512xf32, #tpu.memory_space<vmem>>, vector<32x256xf32>
    %83 = vector.extract_strided_slice %42 {offsets = [0, 6], sizes = [32, 1], strides = [1, 1]} : vector<32x9xf32> to vector<32x1xf32>
    %84 = vector.broadcast %83 : vector<32x1xf32> to vector<32x256xf32>
    %85 = arith.mulf %82, %84 : vector<32x256xf32>
    %86 = vector.broadcast %37 : vector<1x256xf32> to vector<32x256xf32>
    %87 = arith.mulf %85, %86 : vector<32x256xf32>
    %88 = arith.addf %81, %87 : vector<32x256xf32>
    %c0_29 = arith.constant 0 : index
    %c144 = arith.constant 144 : index
    %89 = vector.load %arg9[%c0_29, %c144] : memref<32x512xf32, #tpu.memory_space<vmem>>, vector<32x256xf32>
    %90 = vector.extract_strided_slice %42 {offsets = [0, 7], sizes = [32, 1], strides = [1, 1]} : vector<32x9xf32> to vector<32x1xf32>
    %91 = vector.broadcast %90 : vector<32x1xf32> to vector<32x256xf32>
    %92 = arith.mulf %89, %91 : vector<32x256xf32>
    %93 = arith.addf %88, %92 : vector<32x256xf32>
    %c0_30 = arith.constant 0 : index
    %c145 = arith.constant 145 : index
    %94 = vector.load %arg9[%c0_30, %c145] : memref<32x512xf32, #tpu.memory_space<vmem>>, vector<32x256xf32>
    %95 = vector.extract_strided_slice %42 {offsets = [0, 8], sizes = [32, 1], strides = [1, 1]} : vector<32x9xf32> to vector<32x1xf32>
    %96 = vector.broadcast %95 : vector<32x1xf32> to vector<32x256xf32>
    %97 = arith.mulf %94, %96 : vector<32x256xf32>
    %98 = vector.broadcast %41 : vector<1x256xf32> to vector<32x256xf32>
    %99 = arith.mulf %97, %98 : vector<32x256xf32>
    %100 = arith.addf %93, %99 : vector<32x256xf32>
    %c0_31 = arith.constant 0 : index
    %c0_32 = arith.constant 0 : index
    %101 = vector.load %arg5[%c0_31, %c0_32] : memref<32x1xf32, #tpu.memory_space<vmem>>, vector<32x1xf32>
    %102 = vector.broadcast %101 : vector<32x1xf32> to vector<32x256xf32>
    %103 = arith.addf %100, %102 : vector<32x256xf32>
    %cst_33 = arith.constant 0.000000e+00 : f32
    %cst_34 = arith.constant 6.000000e+00 : f32
    %104 = vector.broadcast %cst_33 : f32 to vector<32x256xf32>
    %105 = arith.maximumf %104, %103 : vector<32x256xf32>
    %106 = vector.broadcast %cst_34 : f32 to vector<32x256xf32>
    %107 = arith.minimumf %106, %105 : vector<32x256xf32>
    %c0_35 = arith.constant 0 : index
    %c0_36 = arith.constant 0 : index
    %108 = vector.load %arg6[%c0_35, %c0_36] : memref<8x32xbf16, #tpu.memory_space<vmem>>, vector<8x32xbf16>
    %109 = arith.truncf %107 : vector<32x256xf32> to vector<32x256xbf16>
    %cst_37 = arith.constant dense<0.000000e+00> : vector<8x256xf32>
    %110 = tpu.matmul %108, %109, %cst_37 {dimension_numbers = #tpu.dot_dimension_numbers<[1], [0], [0], [1], [0, 0, 1, 1], [], []>} : vector<8x32xbf16>, vector<32x256xbf16>, vector<8x256xf32> -> vector<8x256xf32>
    %c0_38 = arith.constant 0 : index
    %c0_39 = arith.constant 0 : index
    %111 = vector.load %arg7[%c0_38, %c0_39] : memref<8x1xf32, #tpu.memory_space<vmem>>, vector<8x1xf32>
    %112 = vector.broadcast %111 : vector<8x1xf32> to vector<8x256xf32>
    %113 = arith.addf %110, %112 : vector<8x256xf32>
    %114 = arith.addf %113, %1 : vector<8x256xf32>
    %c0_40 = arith.constant 0 : index
    %c0_41 = arith.constant 0 : index
    %c0_42 = arith.constant 0 : index
    %115 = vector.load %arg8[%c0_40, %c0_41, %c0_42] : memref<1x8x256xf32, #tpu.memory_space<vmem>>, vector<1x8x256xf32>
    %116 = vector.shape_cast %115 : vector<1x8x256xf32> to vector<8x256xf32>
    %117 = vector.shape_cast %114 : vector<8x256xf32> to vector<1x8x256xf32>
    tpu.vector_store %arg8[%c0_40, %c0_41, %c0_42], %117 {strides = array<i32>} : memref<1x8x256xf32, #tpu.memory_space<vmem>>, vector<1x8x256xf32>,
    return
  }
  func.func @transform_0(%arg0: i32) -> (i32, i32, i32) {
    %c0_i32 = arith.constant 0 : i32
    %c0_i32_0 = arith.constant 0 : i32
    %c0_i32_1 = arith.constant 0 : i32
    return %arg0, %c0_i32, %c0_i32_0 : i32, i32, i32
  }
  func.func @transform_1(%arg0: i32) -> (i32, i32) {
    %c0_i32 = arith.constant 0 : i32
    %c0_i32_0 = arith.constant 0 : i32
    %c0_i32_1 = arith.constant 0 : i32
    return %c0_i32, %c0_i32_0 : i32, i32
  }
  func.func @transform_2(%arg0: i32) -> (i32, i32) {
    %c0_i32 = arith.constant 0 : i32
    %c0_i32_0 = arith.constant 0 : i32
    %c0_i32_1 = arith.constant 0 : i32
    return %c0_i32, %c0_i32_0 : i32, i32
  }
  func.func @transform_3(%arg0: i32) -> (i32, i32) {
    %c0_i32 = arith.constant 0 : i32
    %c0_i32_0 = arith.constant 0 : i32
    %c0_i32_1 = arith.constant 0 : i32
    return %c0_i32, %c0_i32_0 : i32, i32
  }
  func.func @transform_4(%arg0: i32) -> (i32, i32) {
    %c0_i32 = arith.constant 0 : i32
    %c0_i32_0 = arith.constant 0 : i32
    %c0_i32_1 = arith.constant 0 : i32
    return %c0_i32, %c0_i32_0 : i32, i32
  }
  func.func @transform_5(%arg0: i32) -> (i32, i32) {
    %c0_i32 = arith.constant 0 : i32
    %c0_i32_0 = arith.constant 0 : i32
    %c0_i32_1 = arith.constant 0 : i32
    return %c0_i32, %c0_i32_0 : i32, i32
  }
  func.func @transform_6(%arg0: i32) -> (i32, i32) {
    %c0_i32 = arith.constant 0 : i32
    %c0_i32_0 = arith.constant 0 : i32
    %c0_i32_1 = arith.constant 0 : i32
    return %c0_i32, %c0_i32_0 : i32, i32
  }
  func.func @transform_7(%arg0: i32) -> (i32, i32, i32) {
    %c0_i32 = arith.constant 0 : i32
    %c0_i32_0 = arith.constant 0 : i32
    %c0_i32_1 = arith.constant 0 : i32
    return %arg0, %c0_i32, %c0_i32_0 : i32, i32, i32
  }
}

</mosaic_0001>

<llo_original>
// kernel: tpu_custom_call.1
$region0: #{tpu_custom_call.1}
  #allocation0 [shape = 'u32[]', space=smem, size = 0x4, offset = 0x4, fixed_abs, tag = 'smem constant byte address 0x4 - core index']
  #allocation1 [shape = 'u32[144,128]{1,0:T(1,128)}', space=vmem, size = 0x12000, scoped, tag = 'internal scratch']
  #allocation2 [shape = 'f32[32,512]{1,0:T(8,128)}', space=vmem, size = 0x10000, scoped, tag = 'scratch operand']
  %s0 = inlined_call_operand.vmem [shape: f32[2,8,256], index: 0, kind: input, shape index: {}]
  %s1 = inlined_call_operand.vmem [shape: bf16[32,8], index: 1, kind: input, shape index: {}]
  %s2 = inlined_call_operand.vmem [shape: f32[32,1], index: 2, kind: input, shape index: {}]
  %s3 = inlined_call_operand.vmem [shape: f32[32,9], index: 3, kind: input, shape index: {}]
  %s4 = inlined_call_operand.vmem [shape: f32[32,1], index: 4, kind: input, shape index: {}]
  %s5 = inlined_call_operand.vmem [shape: bf16[8,32], index: 5, kind: input, shape index: {}]
  %s6 = inlined_call_operand.vmem [shape: f32[8,1], index: 6, kind: input, shape index: {}]
  %s7 = inlined_call_operand.hbm [shape: f32[2,8,256], index: 7, kind: output, shape index: {}]
  %s8 = sld [smem:[#allocation0]]
  $region61: #{tpu_custom_call.1} parent=0
    _
  %s10 = ssub.s32 1, %s8
  %s11 = scalar_select 0, %s10, %s8
  $region1: #{tpu_custom_call.1} parent=0
    #allocation3 [shape = 'u8[16384]{0}', space=vmem, size = 0x4000, scoped, tag = 'output window, operand 0']
    #allocation4 [shape = 's32[2]{0}', space=sflag, size = 0x8, scoped, tag = 'scoped memory for tpu_custom_call.1']
    %12 = vsyncpa [#allocation4], 0
    %s13 = scalar_lea.sflag [#allocation4], 1
    %14 = vsyncpa %s13, 0
    loop: start=0, step=1, limit=4
    $region2: #{tpu_custom_call.1} parent=1 // loop_pre_header
      _
    $region3: #{tpu_custom_call.1} parent=1 // loop_header
      %s16 = sphi 0, %s20
      %p17 = scmp.ge.s32.totalorder %s16, 4
      %s26 = sphi 0, %s28
      %s29 = sphi 0, %s26
      %s30 = sphi 0, %s29
      %s46 = sphi 0, %s30
      %s50 = sphi 0, %s50
      %s52 = sphi 0, %s50
      %s53 = sphi 0, %s52
      %s67 = sphi 0, %s53
      %s71 = sphi 0, %s71
      %s73 = sphi 0, %s71
      %s74 = sphi 0, %s73
      %s88 = sphi 0, %s74
      %s92 = sphi 0, %s92
      %s94 = sphi 0, %s92
      %s95 = sphi 0, %s94
      %s109 = sphi 0, %s95
      %s113 = sphi 0, %s113
      %s115 = sphi 0, %s113
      %s116 = sphi 0, %s115
      %s130 = sphi 0, %s116
      %s134 = sphi 0, %s134
      %s136 = sphi 0, %s134
      %s137 = sphi 0, %s136
      %s151 = sphi 0, %s137
      %s155 = sphi 0, %s155
      %s157 = sphi 0, %s155
      %s158 = sphi 0, %s157
      %s172 = sphi 0, %s158
      %s178 = sphi 0, %s180
      %s181 = sphi 0, %s178
      %s182 = sphi 0, %s181
      %s198 = sphi 0, %s182
    $region4: #{tpu_custom_call.1} parent=1 // loop_header_branch
      %19 = sbr.rel (%p17) target = $region8
    $region5: #{tpu_custom_call.1} parent=1 // loop_body
      %s21 = ssub.s32 %s16, 1
      %s22 = ssub.s32 %s16, 2
      %s23 = sadd.s32 %s16, 1
      %s24 = ssub.s32 %s16, %s23
      %p25 = scmp.eq.s32.totalorder %s24, 0
      %s27 = sadd.s32 %s26, 1
      %s28 = scalar_select %p25, %s26, %s27
      %p31 = pneg %p25
      %p32 = scmp.eq.s32.totalorder %s16, 1
      %p33 = por %p31, %p32
      %p34 = scmp.ne.s32.totalorder %s26, %s29
      %p35 = scmp.eq.s32.totalorder %s16, 0
      %p36 = por %p34, %p35
      %p37 = scmp.ne.s32.totalorder %s26, %s29
      %p38 = scmp.eq.s32.totalorder %s21, 1
      %p39 = por %p37, %p38
      %p40 = scmp.ne.s32.totalorder %s29, %s30
      %p41 = scmp.eq.s32.totalorder %s21, 0
      %p42 = por %p40, %p41
      %p43 = scmp.ne.s32.totalorder %s29, %s30
      %p44 = scmp.eq.s32.totalorder %s22, 1
      %p45 = por %p43, %p44
      %p47 = scmp.ne.s32.totalorder %s30, %s46
      %p48 = scmp.eq.s32.totalorder %s22, 0
      %p49 = por %p47, %p48
      %s51 = sadd.s32 %s50, 1
      %p54 = scmp.eq.s32.totalorder %s16, 1
      %p55 = scmp.ne.s32.totalorder %s50, %s52
      %p56 = scmp.eq.s32.totalorder %s16, 0
      %p57 = por %p55, %p56
      %p58 = scmp.ne.s32.totalorder %s50, %s52
      %p59 = scmp.eq.s32.totalorder %s21, 1
      %p60 = por %p58, %p59
      %p61 = scmp.ne.s32.totalorder %s52, %s53
      %p62 = scmp.eq.s32.totalorder %s21, 0
      %p63 = por %p61, %p62
      %p64 = scmp.ne.s32.totalorder %s52, %s53
      %p65 = scmp.eq.s32.totalorder %s22, 1
      %p66 = por %p64, %p65
      %p68 = scmp.ne.s32.totalorder %s53, %s67
      %p69 = scmp.eq.s32.totalorder %s22, 0
      %p70 = por %p68, %p69
      %s72 = sadd.s32 %s71, 1
      %p75 = scmp.eq.s32.totalorder %s16, 1
      %p76 = scmp.ne.s32.totalorder %s71, %s73
      %p77 = scmp.eq.s32.totalorder %s16, 0
      %p78 = por %p76, %p77
      %p79 = scmp.ne.s32.totalorder %s71, %s73
      %p80 = scmp.eq.s32.totalorder %s21, 1
      %p81 = por %p79, %p80
      %p82 = scmp.ne.s32.totalorder %s73, %s74
      %p83 = scmp.eq.s32.totalorder %s21, 0
      %p84 = por %p82, %p83
      %p85 = scmp.ne.s32.totalorder %s73, %s74
      %p86 = scmp.eq.s32.totalorder %s22, 1
      %p87 = por %p85, %p86
      %p89 = scmp.ne.s32.totalorder %s74, %s88
      %p90 = scmp.eq.s32.totalorder %s22, 0
      %p91 = por %p89, %p90
      %s93 = sadd.s32 %s92, 1
      %p96 = scmp.eq.s32.totalorder %s16, 1
      %p97 = scmp.ne.s32.totalorder %s92, %s94
      %p98 = scmp.eq.s32.totalorder %s16, 0
      %p99 = por %p97, %p98
      %p100 = scmp.ne.s32.totalorder %s92, %s94
      %p101 = scmp.eq.s32.totalorder %s21, 1
      %p102 = por %p100, %p101
      %p103 = scmp.ne.s32.totalorder %s94, %s95
      %p104 = scmp.eq.s32.totalorder %s21, 0
      %p105 = por %p103, %p104
      %p106 = scmp.ne.s32.totalorder %s94, %s95
      %p107 = scmp.eq.s32.totalorder %s22, 1
      %p108 = por %p106, %p107
      %p110 = scmp.ne.s32.totalorder %s95, %s109
      %p111 = scmp.eq.s32.totalorder %s22, 0
      %p112 = por %p110, %p111
      %s114 = sadd.s32 %s113, 1
      %p117 = scmp.eq.s32.totalorder %s16, 1
      %p118 = scmp.ne.s32.totalorder %s113, %s115
      %p119 = scmp.eq.s32.totalorder %s16, 0
      %p120 = por %p118, %p119
      %p121 = scmp.ne.s32.totalorder %s113, %s115
      %p122 = scmp.eq.s32.totalorder %s21, 1
      %p123 = por %p121, %p122
      %p124 = scmp.ne.s32.totalorder %s115, %s116
      %p125 = scmp.eq.s32.totalorder %s21, 0
      %p126 = por %p124, %p125
      %p127 = scmp.ne.s32.totalorder %s115, %s116
      %p128 = scmp.eq.s32.totalorder %s22, 1
      %p129 = por %p127, %p128
      %p131 = scmp.ne.s32.totalorder %s116, %s130
      %p132 = scmp.eq.s32.totalorder %s22, 0
      %p133 = por %p131, %p132
      %s135 = sadd.s32 %s134, 1
      %p138 = scmp.eq.s32.totalorder %s16, 1
      %p139 = scmp.ne.s32.totalorder %s134, %s136
      %p140 = scmp.eq.s32.totalorder %s16, 0
      %p141 = por %p139, %p140
      %p142 = scmp.ne.s32.totalorder %s134, %s136
      %p143 = scmp.eq.s32.totalorder %s21, 1
      %p144 = por %p142, %p143
      %p145 = scmp.ne.s32.totalorder %s136, %s137
      %p146 = scmp.eq.s32.totalorder %s21, 0
      %p147 = por %p145, %p146
      %p148 = scmp.ne.s32.totalorder %s136, %s137
      %p149 = scmp.eq.s32.totalorder %s22, 1
      %p150 = por %p148, %p149
      %p152 = scmp.ne.s32.totalorder %s137, %s151
      %p153 = scmp.eq.s32.totalorder %s22, 0
      %p154 = por %p152, %p153
      %s156 = sadd.s32 %s155, 1
      %p159 = scmp.eq.s32.totalorder %s16, 1
      %p160 = scmp.ne.s32.totalorder %s155, %s157
      %p161 = scmp.eq.s32.totalorder %s16, 0
      %p162 = por %p160, %p161
      %p163 = scmp.ne.s32.totalorder %s155, %s157
      %p164 = scmp.eq.s32.totalorder %s21, 1
      %p165 = por %p163, %p164
      %p166 = scmp.ne.s32.totalorder %s157, %s158
      %p167 = scmp.eq.s32.totalorder %s21, 0
      %p168 = por %p166, %p167
      %p169 = scmp.ne.s32.totalorder %s157, %s158
      %p170 = scmp.eq.s32.totalorder %s22, 1
      %p171 = por %p169, %p170
      %p173 = scmp.ne.s32.totalorder %s158, %s172
      %p174 = scmp.eq.s32.totalorder %s22, 0
      %p175 = por %p173, %p174
      %s176 = ssub.s32 %s16, %s23
      %p177 = scmp.eq.s32.totalorder %s176, 0
      %s179 = sadd.s32 %s178, 1
      %s180 = scalar_select %p177, %s178, %s179
      %p183 = pneg %p177
      %p184 = scmp.eq.s32.totalorder %s16, 1
      %p185 = por %p183, %p184
      %p186 = scmp.ne.s32.totalorder %s178, %s181
      %p187 = scmp.eq.s32.totalorder %s16, 0
      %p188 = por %p186, %p187
      %p189 = scmp.ne.s32.totalorder %s178, %s181
      %p190 = scmp.eq.s32.totalorder %s21, 1
      %p191 = por %p189, %p190
      %p192 = scmp.ne.s32.totalorder %s181, %s182
      %p193 = scmp.eq.s32.totalorder %s21, 0
      %p194 = por %p192, %p193
      %p195 = scmp.ne.s32.totalorder %s181, %s182
      %p196 = scmp.eq.s32.totalorder %s22, 1
      %p197 = por %p195, %p196
      %p199 = scmp.ne.s32.totalorder %s182, %s198
      %p200 = scmp.eq.s32.totalorder %s22, 0
      %p201 = por %p199, %p200
      %p202 = scmp.le.s32.totalorder 1, %s16
      %p203 = scmp.lt.s32.totalorder %s16, 3
      %p204 = pnand %p202, %p203
      %p205 = pneg %p204
      // Predicated region
      $region9: #{tpu_custom_call.1} parent=5 // pred_check
        _
      $region10: #{tpu_custom_call.1} parent=5 // pred_check_branch
        %207 = sbr.rel (%p204) target = $region12
      $region11: #{tpu_custom_call.1} parent=5 // pred_region
        %s208 = ssub.s32 %s16, 1
        // Predicated region
        $region13: #{tpu_custom_call.1} parent=11 // pred_check
          %p209 = pneg %p63
        $region14: #{tpu_custom_call.1} parent=11 // pred_check_branch
          %211 = sbr.rel (%p209) target = $region16
        $region15: #{tpu_custom_call.1} parent=11 // pred_region
          _
        $region16: #{tpu_custom_call.1} parent=11 // pred_fallthru
          _
        // Predicated region
        $region17: #{tpu_custom_call.1} parent=11 // pred_check
          %p212 = pneg %p84
        $region18: #{tpu_custom_call.1} parent=11 // pred_check_branch
          %214 = sbr.rel (%p212) target = $region20
        $region19: #{tpu_custom_call.1} parent=11 // pred_region
          _
        $region20: #{tpu_custom_call.1} parent=11 // pred_fallthru
          _
        // Predicated region
        $region21: #{tpu_custom_call.1} parent=11 // pred_check
          %p215 = pneg %p105
        $region22: #{tpu_custom_call.1} parent=11 // pred_check_branch
          %217 = sbr.rel (%p215) target = $region24
        $region23: #{tpu_custom_call.1} parent=11 // pred_region
          _
        $region24: #{tpu_custom_call.1} parent=11 // pred_fallthru
          _
        // Predicated region
        $region25: #{tpu_custom_call.1} parent=11 // pred_check
          %p218 = pneg %p126
        $region26: #{tpu_custom_call.1} parent=11 // pred_check_branch
          %220 = sbr.rel (%p218) target = $region28
        $region27: #{tpu_custom_call.1} parent=11 // pred_region
          _
        $region28: #{tpu_custom_call.1} parent=11 // pred_fallthru
          _
        // Predicated region
        $region29: #{tpu_custom_call.1} parent=11 // pred_check
          %p221 = pneg %p147
        $region30: #{tpu_custom_call.1} parent=11 // pred_check_branch
          %223 = sbr.rel (%p221) target = $region32
        $region31: #{tpu_custom_call.1} parent=11 // pred_region
          _
        $region32: #{tpu_custom_call.1} parent=11 // pred_fallthru
          _
        // Predicated region
        $region33: #{tpu_custom_call.1} parent=11 // pred_check
          %p224 = pneg %p168
        $region34: #{tpu_custom_call.1} parent=11 // pred_check_branch
          %226 = sbr.rel (%p224) target = $region36
        $region35: #{tpu_custom_call.1} parent=11 // pred_region
          _
        $region36: #{tpu_custom_call.1} parent=11 // pred_fallthru
          _
      $region12: #{tpu_custom_call.1} parent=5 // pred_fallthru
        _
      %p227 = scmp.lt.s32.totalorder %s16, 2
      // Predicated region
      $region37: #{tpu_custom_call.1} parent=5 // pred_check
        %p228 = pneg %p227
      $region38: #{tpu_custom_call.1} parent=5 // pred_check_branch
        %230 = sbr.rel (%p228) target = $region40
      $region39: #{tpu_custom_call.1} parent=5 // pred_region
        // Predicated region
        $region41: #{tpu_custom_call.1} parent=39 // pred_check
          %p231 = pneg %p36
        $region42: #{tpu_custom_call.1} parent=39 // pred_check_branch
          %233 = sbr.rel (%p231) target = $region44
        $region43: #{tpu_custom_call.1} parent=39 // pred_region
          %p234 = scmp.lt.s32.totalorder %s16, 1
          %s235 = scalar_select %p234, %s16, 1
          %s236 = smul.addr %s235, 2
          %s237 = smul.addr %s236, 8
          %s238 = scalar_lea.vmem %s0, %s237
        $region44: #{tpu_custom_call.1} parent=39 // pred_fallthru
          _
      $region40: #{tpu_custom_call.1} parent=5 // pred_fallthru
        _
      %p239 = scmp.le.s32.totalorder 1, %s16
      %p240 = scmp.lt.s32.totalorder %s16, 3
      %p241 = pnand %p239, %p240
      %p242 = pneg %p241
      // Predicated region
      $region45: #{tpu_custom_call.1} parent=5 // pred_check
        _
      $region46: #{tpu_custom_call.1} parent=5 // pred_check_branch
        %244 = sbr.rel (%p241) target = $region48
      $region47: #{tpu_custom_call.1} parent=5 // pred_region
        %s245 = ssub.s32 %s16, 1
        %p246 = scmp.lt.s32.totalorder %s21, 1
        %s247 = scalar_select %p246, %s21, 1
        %s248 = smul.addr %s247, 2
        %s249 = smul.addr %s248, 8
        %s250 = scalar_lea.vmem %s0, %s249
        %p251 = pneg %p42
        %p252 = pneg %p39
        %p253 = pneg %p63
        %p254 = pneg %p60
        %p255 = pneg %p84
        %p256 = pneg %p81
        %p257 = pneg %p105
        %p258 = pneg %p102
        %p259 = pneg %p126
        %p260 = pneg %p123
        %p261 = pneg %p147
        %p262 = pneg %p144
        %p263 = pneg %p168
        %p264 = pneg %p165
        %p265 = pneg %p194
        %p266 = pneg %p191
        %s267 = sand.u32 %s181, 1
        %s268 = scalar_lea.sflag [#allocation4], %s267
        %s269 = sand.u32 %s181, 1
        %s270 = smul.addr %s269, 16
        %s271 = scalar_lea.vmem [#allocation3], %s270
        %p272 = scmp.lt.s32.totalorder %s21, 1
        %s273 = scalar_select %p272, %s21, 1
        %s274 = smul.addr %s273, 2
        %s275 = smul.addr %s274, 8
        %s276 = scalar_lea.vmem %s0, %s275
        %v278 = vld [vmem:[%s276] sm:$0xff]
        %v279 = vld [vmem:[%s276 + $0x8] sm:$0xff]
        %v280 = vld [vmem:[%s1] sm:$0xf]
        %v281 = vld [vmem:[%s1 + $0x4] sm:$0xf]
        %v282 = vld [vmem:[%s1 + $0x8] sm:$0xf]
        %v283 = vld [vmem:[%s1 + $0xc] sm:$0xf]
        %v284 = vpack.c.bf16 %v278, %v278
        %v285 = vpack.c.bf16 %v279, %v279
        %v286 = vld [vmem:[%s2] sm:$0xff]
        %v287 = vld [vmem:[%s2 + $0x8] sm:$0xff]
        %v288 = vld [vmem:[%s2 + $0x10] sm:$0xff]
        %v289 = vld [vmem:[%s2 + $0x18] sm:$0xff]
        %291 = vset.pattern.permute.xlu0 0
        %292 = vperm.xlu0 %291, %v286
        %v293 = vpop.permute.xlu0 %292
        %296 = vset.pattern.permute.xlu0 0
        %297 = vperm.xlu0 %296, %v287
        %v298 = vpop.permute.xlu0 %297
        %301 = vset.pattern.permute.xlu0 0
        %302 = vperm.xlu0 %301, %v288
        %v303 = vpop.permute.xlu0 %302
        %306 = vset.pattern.permute.xlu0 0
        %307 = vperm.xlu0 %306, %v289
        %v308 = vpop.permute.xlu0 %307
        %v314 = vunpack.c.l.b16 %v280
        %v315 = vunpack.c.l.b16 %v281
        %v316 = vunpack.c.l.b16 %v282
        %v317 = vunpack.c.l.b16 %v283
        %v318 = vpack.c.b16 %v315, %v314
        %v319 = vpack.c.b16 %v317, %v316
        %vm320 = vcmask 64512
        %v322 = vsel %vm320, %v318, 0
        %v325 = vsel %vm320, %v319, 0
        %vm327 = vcmask 1043456
        %v329 = vsel %vm327, %v284, 0
        %v332 = vsel %vm327, %v285, 0
        %334 = vmatprep.subr.bf16.mxu0 %v332
        %335 = vmatpush1.bf16.msra.mxu0 %v329
        %336 = vmatprep.subr.bf16.mxu0 0
        %337 = vmatpush1.bf16.msra.mxu0 0
        %338 = vmatprep.subr.bf16.mxu0 0
        %339 = vmatpush1.bf16.msra.mxu0 0
        %340 = vmatprep.subr.bf16.mxu0 0
        %341 = vmatpush1.bf16.msra.mxu0 0
        %342 = vmatprep.subr.bf16.mxu0 0
        %343 = vmatpush1.bf16.msra.mxu0 0
        %344 = vmatprep.subr.bf16.mxu0 0
        %345 = vmatpush1.bf16.msra.mxu0 0
        %346 = vmatprep.subr.bf16.mxu0 0
        %347 = vmatpush1.bf16.msra.mxu0 0
        %348 = vmatprep.subr.bf16.mxu0 0
        %349 = vmatpush1.bf16.msra.mxu0 0
        %350 = vmatprep.subr.bf16.mxu0 0
        %351 = vmatpush1.bf16.msra.mxu0 0
        %352 = vmatprep.subr.bf16.mxu0 0
        %353 = vmatpush1.bf16.msra.mxu0 0
        %354 = vmatprep.subr.bf16.mxu0 0
        %355 = vmatpush1.bf16.msra.mxu0 0
        %356 = vmatprep.subr.bf16.mxu0 0
        %357 = vmatpush1.bf16.msra.mxu0 0
        %358 = vmatprep.subr.bf16.mxu0 0
        %359 = vmatpush1.bf16.msra.mxu0 0
        %360 = vmatprep.subr.bf16.mxu0 0
        %361 = vmatpush1.bf16.msra.mxu0 0
        %362 = vmatprep.subr.bf16.mxu0 0
        %363 = vmatpush1.bf16.msra.mxu0 0
        %364 = vmatprep.subr.bf16.mxu0 0
        %365 = vmatpush1.bf16.msra.mxu0 0
        %366 = vmatprep.mubr.bf16.mxu0 0
        %367 = vmatmul.mubr.bf16.gmra.mrb[0].mxu0 %v322
        %v368 = vpop.f32.mrb[0].mxu0
        %v369 = vadd.f32 %v293, %v368
        %v370 = vpop.f32.mrb[0].mxu0
        %v371 = vadd.f32 %v293, %v370
        %v372 = vpop.f32.mrb[0].mxu0
        %v373 = vadd.f32 %v298, %v372
        %v374 = vpop.f32.mrb[0].mxu0
        %v375 = vadd.f32 %v298, %v374
        %376 = vmatprep.mubr.bf16.mxu0 0
        %377 = vmatmul.mubr.bf16.gmra.mrb[0].mxu0 %v325
        %v378 = vpop.f32.mrb[0].mxu0
        %v379 = vadd.f32 %v303, %v378
        %v380 = vpop.f32.mrb[0].mxu0
        %v381 = vadd.f32 %v303, %v380
        %v382 = vpop.f32.mrb[0].mxu0
        %v383 = vadd.f32 %v308, %v382
        %v384 = vpop.f32.mrb[0].mxu0
        %v385 = vadd.f32 %v308, %v384
        %386 = vdwg.mxu0
        %v387 = vmax.f32 %v369, 0.0
        %v388 = vmax.f32 %v371, 0.0
        %v389 = vmax.f32 %v373, 0.0
        %v390 = vmax.f32 %v375, 0.0
        %v391 = vmax.f32 %v379, 0.0
        %v392 = vmax.f32 %v381, 0.0
        %v393 = vmax.f32 %v383, 0.0
        %v394 = vmax.f32 %v385, 0.0
        %v395 = vmin.f32 %v387, 6.0
        %v396 = vmin.f32 %v388, 6.0
        %v397 = vmin.f32 %v389, 6.0
        %v398 = vmin.f32 %v390, 6.0
        %v399 = vmin.f32 %v391, 6.0
        %v400 = vmin.f32 %v392, 6.0
        %v401 = vmin.f32 %v393, 6.0
        %v402 = vmin.f32 %v394, 6.0
        %403 = vst [vmem:[#allocation2] sm:$0xff] 0.0
        %404 = vst [vmem:[#allocation2 + $0x20] sm:$0xff] 0.0
        %405 = vst [vmem:[#allocation2 + $0x40] sm:$0xff] 0.0
        %406 = vst [vmem:[#allocation2 + $0x60] sm:$0xff] 0.0
        %407 = vst [vmem:[#allocation2 + $0x18] sm:$0xff] 0.0
        %408 = vst [vmem:[#allocation2 + $0x38] sm:$0xff] 0.0
        %409 = vst [vmem:[#allocation2 + $0x58] sm:$0xff] 0.0
        %410 = vst [vmem:[#allocation2 + $0x78] sm:$0xff] 0.0
        %411 = vst [vmem:[#allocation2 + $0x8] sm:$0xff] %v395
        %412 = vst [vmem:[#allocation2 + $0x10] sm:$0xff] %v396
        %413 = vst [vmem:[#allocation2 + $0x28] sm:$0xff] %v397
        %414 = vst [vmem:[#allocation2 + $0x30] sm:$0xff] %v398
        %415 = vst [vmem:[#allocation2 + $0x48] sm:$0xff] %v399
        %416 = vst [vmem:[#allocation2 + $0x50] sm:$0xff] %v400
        %417 = vst [vmem:[#allocation2 + $0x68] sm:$0xff] %v401
        %418 = vst [vmem:[#allocation2 + $0x70] sm:$0xff] %v402
        %v419 = vlaneseq
        %v420 = vand.u32 %v419, 127
        %v421 = vadd.s32 %v420, 128
        %vm422 = vcmp.lt.s32.totalorder %v420, 0
        %v423 = vsub.s32 0, %v420
        %v424 = vsel %vm422, %v423, %v420
        %v425 = vshrl.u32 %v424, 4
        %v426 = vand.u32 %v424, 15
        %v427 = vsub.s32 0, %v426
        %v428 = vsel %vm422, %v427, %v426
        %vm429 = vcmp.lt.s32.totalorder %v421, 0
        %v430 = vsub.s32 0, %v421
        %v431 = vsel %vm429, %v430, %v421
        %v432 = vshrl.u32 %v431, 4
        %v433 = vand.u32 %v431, 15
        %v434 = vsub.s32 0, %v433
        %v435 = vsel %vm429, %v434, %v433
        %vm436 = vcmp.ne.s32.totalorder %v428, 0
        %vm437 = vcmp.ne.s32.totalorder %v435, 0
        %vm438 = vcmp.lt.s32.totalorder %v428, 0
        %vm439 = vcmp.lt.s32.totalorder %v435, 0
        %vm440 = vmand %vm438, %vm436
        %vm441 = vmand %vm439, %vm437
        %v442 = vadd.s32 %v428, 16
        %v443 = vadd.s32 %v435, 16
        %v444 = vsel %vm440, %v442, %v428
        %v445 = vsel %vm441, %v443, %v435
        %vm446 = vcmp.gt.s32.totalorder %v444, 0
        %vm447 = vcmp.gt.s32.totalorder %v445, 0
        %v448 = vsel %vm446, 1, 0
        %v449 = vsel %vm447, 1, 0
        %v450 = vcvt.s32.f32 %v448
        %v451 = vcvt.s32.f32 %v449
        %vm452 = vcmp.lt.s32.totalorder %v444, 15
        %vm453 = vcmp.lt.s32.totalorder %v445, 15
        %v454 = vsel %vm452, 1, 0
        %v455 = vsel %vm453, 1, 0
        %v456 = vcvt.s32.f32 %v454
        %v457 = vcvt.s32.f32 %v455
        %v458 = vld [vmem:[%s3] sm:$0xff]
        %v459 = vld [vmem:[%s3 + $0x8] sm:$0xff]
        %v460 = vld [vmem:[%s3 + $0x10] sm:$0xff]
        %v461 = vld [vmem:[%s3 + $0x18] sm:$0xff]
        %v462 = vld [vmem:[#allocation2] sm:$0xff]
        %v463 = vld [vmem:[#allocation2 + $0x8] sm:$0xff]
        %v464 = vld [vmem:[#allocation2 + $0x10] sm:$0xff]
        %v465 = vld [vmem:[#allocation2 + $0x20] sm:$0xff]
        %v466 = vld [vmem:[#allocation2 + $0x28] sm:$0xff]
        %v467 = vld [vmem:[#allocation2 + $0x30] sm:$0xff]
        %v468 = vld [vmem:[#allocation2 + $0x40] sm:$0xff]
        %v469 = vld [vmem:[#allocation2 + $0x48] sm:$0xff]
        %v470 = vld [vmem:[#allocation2 + $0x50] sm:$0xff]
        %v471 = vld [vmem:[#allocation2 + $0x60] sm:$0xff]
        %v472 = vld [vmem:[#allocation2 + $0x68] sm:$0xff]
        %v473 = vld [vmem:[#allocation2 + $0x70] sm:$0xff]
        %475 = vset.pattern.permute.xlu0 0
        %476 = vperm.xlu0 %475, %v458
        %v477 = vpop.permute.xlu0 %476
        %480 = vset.pattern.permute.xlu0 0
        %481 = vperm.xlu0 %480, %v459
        %v482 = vpop.permute.xlu0 %481
        %485 = vset.pattern.permute.xlu0 0
        %486 = vperm.xlu0 %485, %v460
        %v487 = vpop.permute.xlu0 %486
        %490 = vset.pattern.permute.xlu0 0
        %491 = vperm.xlu0 %490, %v461
        %v492 = vpop.permute.xlu0 %491
        %v494 = vmul.f32 %v462, %v477
        %v495 = vmul.f32 %v463, %v477
        %v496 = vmul.f32 %v464, %v477
        %v497 = vmul.f32 %v465, %v482
        %v498 = vmul.f32 %v466, %v482
        %v499 = vmul.f32 %v467, %v482
        %v500 = vmul.f32 %v468, %v487
        %v501 = vmul.f32 %v469, %v487
        %v502 = vmul.f32 %v470, %v487
        %v503 = vmul.f32 %v471, %v492
        %v504 = vmul.f32 %v472, %v492
        %v505 = vmul.f32 %v473, %v492
        %508 = vrot.lane.b32.xlu0 %v450, 111
        %v509 = vpop.permute.xlu0 %508
        %510 = vrot.lane.b32.xlu0 %v451, 111
        %v511 = vpop.permute.xlu0 %510
        %vm512 = vcmask 908288
        %v513 = vsel %vm512, %v509, %v511
        %v517 = vmul.f32 %v494, %v509
        %v518 = vmul.f32 %v495, %v513
        %v519 = vmul.f32 %v496, %v511
        %v520 = vmul.f32 %v497, %v509
        %v521 = vmul.f32 %v498, %v513
        %v522 = vmul.f32 %v499, %v511
        %v523 = vmul.f32 %v500, %v509
        %v524 = vmul.f32 %v501, %v513
        %v525 = vmul.f32 %v502, %v511
        %v526 = vmul.f32 %v503, %v509
        %v527 = vmul.f32 %v504, %v513
        %v528 = vmul.f32 %v505, %v511
        %v529 = vadd.f32 %v517, 0.0
        %v530 = vadd.f32 %v518, 0.0
        %v531 = vadd.f32 %v519, 0.0
        %v532 = vadd.f32 %v520, 0.0
        %v533 = vadd.f32 %v521, 0.0
        %v534 = vadd.f32 %v522, 0.0
        %v535 = vadd.f32 %v523, 0.0
        %v536 = vadd.f32 %v524, 0.0
        %v537 = vadd.f32 %v525, 0.0
        %v538 = vadd.f32 %v526, 0.0
        %v539 = vadd.f32 %v527, 0.0
        %v540 = vadd.f32 %v528, 0.0
        %541 = vset.pattern.permute.xlu0 1
        %542 = vperm.xlu0 %541, %v458
        %v543 = vpop.permute.xlu0 %542
        %545 = vset.pattern.permute.xlu0 1
        %546 = vperm.xlu0 %545, %v459
        %v547 = vpop.permute.xlu0 %546
        %549 = vset.pattern.permute.xlu0 1
        %550 = vperm.xlu0 %549, %v460
        %v551 = vpop.permute.xlu0 %550
        %553 = vset.pattern.permute.xlu0 1
        %554 = vperm.xlu0 %553, %v461
        %v555 = vpop.permute.xlu0 %554
        %v557 = vmul.f32 %v462, %v543
        %v558 = vmul.f32 %v463, %v543
        %v559 = vmul.f32 %v464, %v543
        %v560 = vmul.f32 %v465, %v547
        %v561 = vmul.f32 %v466, %v547
        %v562 = vmul.f32 %v467, %v547
        %v563 = vmul.f32 %v468, %v551
        %v564 = vmul.f32 %v469, %v551
        %v565 = vmul.f32 %v470, %v551
        %v566 = vmul.f32 %v471, %v555
        %v567 = vmul.f32 %v472, %v555
        %v568 = vmul.f32 %v473, %v555
        %581 = vrot.lane.b32.xlu0 %v557, 127
        %v582 = vpop.permute.xlu0 %581
        %583 = vrot.lane.b32.xlu0 %v558, 127
        %v584 = vpop.permute.xlu0 %583
        %585 = vrot.lane.b32.xlu0 %v559, 127
        %v586 = vpop.permute.xlu0 %585
        %587 = vrot.lane.b32.xlu0 %v560, 127
        %v588 = vpop.permute.xlu0 %587
        %589 = vrot.lane.b32.xlu0 %v561, 127
        %v590 = vpop.permute.xlu0 %589
        %591 = vrot.lane.b32.xlu0 %v562, 127
        %v592 = vpop.permute.xlu0 %591
        %593 = vrot.lane.b32.xlu0 %v563, 127
        %v594 = vpop.permute.xlu0 %593
        %595 = vrot.lane.b32.xlu0 %v564, 127
        %v596 = vpop.permute.xlu0 %595
        %597 = vrot.lane.b32.xlu0 %v565, 127
        %v598 = vpop.permute.xlu0 %597
        %599 = vrot.lane.b32.xlu0 %v566, 127
        %v600 = vpop.permute.xlu0 %599
        %601 = vrot.lane.b32.xlu0 %v567, 127
        %v602 = vpop.permute.xlu0 %601
        %603 = vrot.lane.b32.xlu0 %v568, 127
        %v604 = vpop.permute.xlu0 %603
        %vm605 = vcmask 1039360
        %v606 = vsel %vm605, %v582, %v584
        %v607 = vsel %vm605, %v584, %v586
        %v608 = vsel %vm605, %v588, %v590
        %v609 = vsel %vm605, %v590, %v592
        %v610 = vsel %vm605, %v594, %v596
        %v611 = vsel %vm605, %v596, %v598
        %v612 = vsel %vm605, %v600, %v602
        %v613 = vsel %vm605, %v602, %v604
        %v626 = vadd.f32 %v529, %v606
        %v627 = vadd.f32 %v530, %v607
        %v628 = vadd.f32 %v531, %v586
        %v629 = vadd.f32 %v532, %v608
        %v630 = vadd.f32 %v533, %v609
        %v631 = vadd.f32 %v534, %v592
        %v632 = vadd.f32 %v535, %v610
        %v633 = vadd.f32 %v536, %v611
        %v634 = vadd.f32 %v537, %v598
        %v635 = vadd.f32 %v538, %v612
        %v636 = vadd.f32 %v539, %v613
        %v637 = vadd.f32 %v540, %v604
        %638 = vset.pattern.permute.xlu0 2
        %639 = vperm.xlu0 %638, %v458
        %v640 = vpop.permute.xlu0 %639
        %642 = vset.pattern.permute.xlu0 2
        %643 = vperm.xlu0 %642, %v459
        %v644 = vpop.permute.xlu0 %643
        %646 = vset.pattern.permute.xlu0 2
        %647 = vperm.xlu0 %646, %v460
        %v648 = vpop.permute.xlu0 %647
        %650 = vset.pattern.permute.xlu0 2
        %651 = vperm.xlu0 %650, %v461
        %v652 = vpop.permute.xlu0 %651
        %v654 = vmul.f32 %v462, %v640
        %v655 = vmul.f32 %v463, %v640
        %v656 = vmul.f32 %v464, %v640
        %v657 = vmul.f32 %v465, %v644
        %v658 = vmul.f32 %v466, %v644
        %v659 = vmul.f32 %v467, %v644
        %v660 = vmul.f32 %v468, %v648
        %v661 = vmul.f32 %v469, %v648
        %v662 = vmul.f32 %v470, %v648
        %v663 = vmul.f32 %v471, %v652
        %v664 = vmul.f32 %v472, %v652
        %v665 = vmul.f32 %v473, %v652
        %668 = vrot.lane.b32.xlu0 %v456, 113
        %v669 = vpop.permute.xlu0 %668
        %670 = vrot.lane.b32.xlu0 %v457, 113
        %v671 = vpop.permute.xlu0 %670
        %vm672 = vcmask 924672
        %v673 = vsel %vm672, %v669, %v671
        %v677 = vmul.f32 %v654, %v669
        %v678 = vmul.f32 %v655, %v673
        %v679 = vmul.f32 %v656, %v671
        %v680 = vmul.f32 %v657, %v669
        %v681 = vmul.f32 %v658, %v673
        %v682 = vmul.f32 %v659, %v671
        %v683 = vmul.f32 %v660, %v669
        %v684 = vmul.f32 %v661, %v673
        %v685 = vmul.f32 %v662, %v671
        %v686 = vmul.f32 %v663, %v669
        %v687 = vmul.f32 %v664, %v673
        %v688 = vmul.f32 %v665, %v671
        %701 = vrot.lane.b32.xlu0 %v677, 126
        %v702 = vpop.permute.xlu0 %701
        %703 = vrot.lane.b32.xlu0 %v678, 126
        %v704 = vpop.permute.xlu0 %703
        %705 = vrot.lane.b32.xlu0 %v679, 126
        %v706 = vpop.permute.xlu0 %705
        %707 = vrot.lane.b32.xlu0 %v680, 126
        %v708 = vpop.permute.xlu0 %707
        %709 = vrot.lane.b32.xlu0 %v681, 126
        %v710 = vpop.permute.xlu0 %709
        %711 = vrot.lane.b32.xlu0 %v682, 126
        %v712 = vpop.permute.xlu0 %711
        %713 = vrot.lane.b32.xlu0 %v683, 126
        %v714 = vpop.permute.xlu0 %713
        %715 = vrot.lane.b32.xlu0 %v684, 126
        %v716 = vpop.permute.xlu0 %715
        %717 = vrot.lane.b32.xlu0 %v685, 126
        %v718 = vpop.permute.xlu0 %717
        %719 = vrot.lane.b32.xlu0 %v686, 126
        %v720 = vpop.permute.xlu0 %719
        %721 = vrot.lane.b32.xlu0 %v687, 126
        %v722 = vpop.permute.xlu0 %721
        %723 = vrot.lane.b32.xlu0 %v688, 126
        %v724 = vpop.permute.xlu0 %723
        %vm725 = vcmask 1031168
        %v726 = vsel %vm725, %v702, %v704
        %v727 = vsel %vm725, %v704, %v706
        %v728 = vsel %vm725, %v708, %v710
        %v729 = vsel %vm725, %v710, %v712
        %v730 = vsel %vm725, %v714, %v716
        %v731 = vsel %vm725, %v716, %v718
        %v732 = vsel %vm725, %v720, %v722
        %v733 = vsel %vm725, %v722, %v724
        %v746 = vadd.f32 %v626, %v726
        %v747 = vadd.f32 %v627, %v727
        %v748 = vadd.f32 %v628, %v706
        %v749 = vadd.f32 %v629, %v728
        %v750 = vadd.f32 %v630, %v729
        %v751 = vadd.f32 %v631, %v712
        %v752 = vadd.f32 %v632, %v730
        %v753 = vadd.f32 %v633, %v731
        %v754 = vadd.f32 %v634, %v718
        %v755 = vadd.f32 %v635, %v732
        %v756 = vadd.f32 %v636, %v733
        %v757 = vadd.f32 %v637, %v724
        %758 = vset.pattern.permute.xlu0 3
        %759 = vperm.xlu0 %758, %v458
        %v760 = vpop.permute.xlu0 %759
        %762 = vset.pattern.permute.xlu0 3
        %763 = vperm.xlu0 %762, %v459
        %v764 = vpop.permute.xlu0 %763
        %766 = vset.pattern.permute.xlu0 3
        %767 = vperm.xlu0 %766, %v460
        %v768 = vpop.permute.xlu0 %767
        %770 = vset.pattern.permute.xlu0 3
        %771 = vperm.xlu0 %770, %v461
        %v772 = vpop.permute.xlu0 %771
        %v774 = vmul.f32 %v462, %v760
        %v775 = vmul.f32 %v463, %v760
        %v776 = vmul.f32 %v464, %v760
        %v777 = vmul.f32 %v465, %v764
        %v778 = vmul.f32 %v466, %v764
        %v779 = vmul.f32 %v467, %v764
        %v780 = vmul.f32 %v468, %v768
        %v781 = vmul.f32 %v469, %v768
        %v782 = vmul.f32 %v470, %v768
        %v783 = vmul.f32 %v471, %v772
        %v784 = vmul.f32 %v472, %v772
        %v785 = vmul.f32 %v473, %v772
        %786 = vrot.lane.b32.xlu0 %v450, 127
        %v787 = vpop.permute.xlu0 %786
        %788 = vrot.lane.b32.xlu0 %v451, 127
        %v789 = vpop.permute.xlu0 %788
        %v790 = vsel %vm605, %v787, %v789
        %v794 = vmul.f32 %v774, %v787
        %v795 = vmul.f32 %v775, %v790
        %v796 = vmul.f32 %v776, %v789
        %v797 = vmul.f32 %v777, %v787
        %v798 = vmul.f32 %v778, %v790
        %v799 = vmul.f32 %v779, %v789
        %v800 = vmul.f32 %v780, %v787
        %v801 = vmul.f32 %v781, %v790
        %v802 = vmul.f32 %v782, %v789
        %v803 = vmul.f32 %v783, %v787
        %v804 = vmul.f32 %v784, %v790
        %v805 = vmul.f32 %v785, %v789
        %818 = vrot.lane.b32.xlu0 %v794, 112
        %v819 = vpop.permute.xlu0 %818
        %820 = vrot.lane.b32.xlu0 %v795, 112
        %v821 = vpop.permute.xlu0 %820
        %822 = vrot.lane.b32.xlu0 %v796, 112
        %v823 = vpop.permute.xlu0 %822
        %824 = vrot.lane.b32.xlu0 %v797, 112
        %v825 = vpop.permute.xlu0 %824
        %826 = vrot.lane.b32.xlu0 %v798, 112
        %v827 = vpop.permute.xlu0 %826
        %828 = vrot.lane.b32.xlu0 %v799, 112
        %v829 = vpop.permute.xlu0 %828
        %830 = vrot.lane.b32.xlu0 %v800, 112
        %v831 = vpop.permute.xlu0 %830
        %832 = vrot.lane.b32.xlu0 %v801, 112
        %v833 = vpop.permute.xlu0 %832
        %834 = vrot.lane.b32.xlu0 %v802, 112
        %v835 = vpop.permute.xlu0 %834
        %836 = vrot.lane.b32.xlu0 %v803, 112
        %v837 = vpop.permute.xlu0 %836
        %838 = vrot.lane.b32.xlu0 %v804, 112
        %v839 = vpop.permute.xlu0 %838
        %840 = vrot.lane.b32.xlu0 %v805, 112
        %v841 = vpop.permute.xlu0 %840
        %vm842 = vcmask 916480
        %v843 = vsel %vm842, %v819, %v821
        %v844 = vsel %vm842, %v821, %v823
        %v845 = vsel %vm842, %v825, %v827
        %v846 = vsel %vm842, %v827, %v829
        %v847 = vsel %vm842, %v831, %v833
        %v848 = vsel %vm842, %v833, %v835
        %v849 = vsel %vm842, %v837, %v839
        %v850 = vsel %vm842, %v839, %v841
        %v863 = vadd.f32 %v746, %v843
        %v864 = vadd.f32 %v747, %v844
        %v865 = vadd.f32 %v748, %v823
        %v866 = vadd.f32 %v749, %v845
        %v867 = vadd.f32 %v750, %v846
        %v868 = vadd.f32 %v751, %v829
        %v869 = vadd.f32 %v752, %v847
        %v870 = vadd.f32 %v753, %v848
        %v871 = vadd.f32 %v754, %v835
        %v872 = vadd.f32 %v755, %v849
        %v873 = vadd.f32 %v756, %v850
        %v874 = vadd.f32 %v757, %v841
        %875 = vset.pattern.permute.xlu0 4
        %876 = vperm.xlu0 %875, %v458
        %v877 = vpop.permute.xlu0 %876
        %879 = vset.pattern.permute.xlu0 4
        %880 = vperm.xlu0 %879, %v459
        %v881 = vpop.permute.xlu0 %880
        %883 = vset.pattern.permute.xlu0 4
        %884 = vperm.xlu0 %883, %v460
        %v885 = vpop.permute.xlu0 %884
        %887 = vset.pattern.permute.xlu0 4
        %888 = vperm.xlu0 %887, %v461
        %v889 = vpop.permute.xlu0 %888
        %v891 = vmul.f32 %v463, %v877
        %v892 = vmul.f32 %v464, %v877
        %v893 = vmul.f32 %v466, %v881
        %v894 = vmul.f32 %v467, %v881
        %v895 = vmul.f32 %v469, %v885
        %v896 = vmul.f32 %v470, %v885
        %v897 = vmul.f32 %v472, %v889
        %v898 = vmul.f32 %v473, %v889
        %907 = vrot.lane.b32.xlu0 %v891, 111
        %v908 = vpop.permute.xlu0 %907
        %909 = vrot.lane.b32.xlu0 %v892, 111
        %v910 = vpop.permute.xlu0 %909
        %911 = vrot.lane.b32.xlu0 %v893, 111
        %v912 = vpop.permute.xlu0 %911
        %913 = vrot.lane.b32.xlu0 %v894, 111
        %v914 = vpop.permute.xlu0 %913
        %915 = vrot.lane.b32.xlu0 %v895, 111
        %v916 = vpop.permute.xlu0 %915
        %917 = vrot.lane.b32.xlu0 %v896, 111
        %v918 = vpop.permute.xlu0 %917
        %919 = vrot.lane.b32.xlu0 %v897, 111
        %v920 = vpop.permute.xlu0 %919
        %921 = vrot.lane.b32.xlu0 %v898, 111
        %v922 = vpop.permute.xlu0 %921
        %v923 = vsel %vm512, %v908, %v910
        %v924 = vsel %vm512, %v912, %v914
        %v925 = vsel %vm512, %v916, %v918
        %v926 = vsel %vm512, %v920, %v922
        %v939 = vadd.f32 %v863, %v908
        %v940 = vadd.f32 %v864, %v923
        %v941 = vadd.f32 %v865, %v910
        %v942 = vadd.f32 %v866, %v912
        %v943 = vadd.f32 %v867, %v924
        %v944 = vadd.f32 %v868, %v914
        %v945 = vadd.f32 %v869, %v916
        %v946 = vadd.f32 %v870, %v925
        %v947 = vadd.f32 %v871, %v918
        %v948 = vadd.f32 %v872, %v920
        %v949 = vadd.f32 %v873, %v926
        %v950 = vadd.f32 %v874, %v922
        %v951 = vld [vmem:[#allocation2 + $0x8] sm:$0xff]
        %v952 = vld [vmem:[#allocation2 + $0x10] sm:$0xff]
        %v953 = vld [vmem:[#allocation2 + $0x18] sm:$0xff]
        %v954 = vld [vmem:[#allocation2 + $0x28] sm:$0xff]
        %v955 = vld [vmem:[#allocation2 + $0x30] sm:$0xff]
        %v956 = vld [vmem:[#allocation2 + $0x38] sm:$0xff]
        %v957 = vld [vmem:[#allocation2 + $0x48] sm:$0xff]
        %v958 = vld [vmem:[#allocation2 + $0x50] sm:$0xff]
        %v959 = vld [vmem:[#allocation2 + $0x58] sm:$0xff]
        %v960 = vld [vmem:[#allocation2 + $0x68] sm:$0xff]
        %v961 = vld [vmem:[#allocation2 + $0x70] sm:$0xff]
        %v962 = vld [vmem:[#allocation2 + $0x78] sm:$0xff]
        %963 = vset.pattern.permute.xlu0 5
        %964 = vperm.xlu0 %963, %v458
        %v965 = vpop.permute.xlu0 %964
        %967 = vset.pattern.permute.xlu0 5
        %968 = vperm.xlu0 %967, %v459
        %v969 = vpop.permute.xlu0 %968
        %971 = vset.pattern.permute.xlu0 5
        %972 = vperm.xlu0 %971, %v460
        %v973 = vpop.permute.xlu0 %972
        %975 = vset.pattern.permute.xlu0 5
        %976 = vperm.xlu0 %975, %v461
        %v977 = vpop.permute.xlu0 %976
        %v979 = vmul.f32 %v951, %v965
        %v980 = vmul.f32 %v952, %v965
        %v981 = vmul.f32 %v953, %v965
        %v982 = vmul.f32 %v954, %v969
        %v983 = vmul.f32 %v955, %v969
        %v984 = vmul.f32 %v956, %v969
        %v985 = vmul.f32 %v957, %v973
        %v986 = vmul.f32 %v958, %v973
        %v987 = vmul.f32 %v959, %v973
        %v988 = vmul.f32 %v960, %v977
        %v989 = vmul.f32 %v961, %v977
        %v990 = vmul.f32 %v962, %v977
        %991 = vrot.lane.b32.xlu0 %v456, 1
        %v992 = vpop.permute.xlu0 %991
        %993 = vrot.lane.b32.xlu0 %v457, 1
        %v994 = vpop.permute.xlu0 %993
        %vm995 = vcmask 7168
        %v996 = vsel %vm995, %v992, %v994
        %v1000 = vmul.f32 %v979, %v992
        %v1001 = vmul.f32 %v980, %v996
        %v1002 = vmul.f32 %v981, %v994
        %v1003 = vmul.f32 %v982, %v992
        %v1004 = vmul.f32 %v983, %v996
        %v1005 = vmul.f32 %v984, %v994
        %v1006 = vmul.f32 %v985, %v992
        %v1007 = vmul.f32 %v986, %v996
        %v1008 = vmul.f32 %v987, %v994
        %v1009 = vmul.f32 %v988, %v992
        %v1010 = vmul.f32 %v989, %v996
        %v1011 = vmul.f32 %v990, %v994
        %1024 = vrot.lane.b32.xlu0 %v1000, 110
        %v1025 = vpop.permute.xlu0 %1024
        %1026 = vrot.lane.b32.xlu0 %v1001, 110
        %v1027 = vpop.permute.xlu0 %1026
        %1028 = vrot.lane.b32.xlu0 %v1002, 110
        %v1029 = vpop.permute.xlu0 %1028
        %1030 = vrot.lane.b32.xlu0 %v1003, 110
        %v1031 = vpop.permute.xlu0 %1030
        %1032 = vrot.lane.b32.xlu0 %v1004, 110
        %v1033 = vpop.permute.xlu0 %1032
        %1034 = vrot.lane.b32.xlu0 %v1005, 110
        %v1035 = vpop.permute.xlu0 %1034
        %1036 = vrot.lane.b32.xlu0 %v1006, 110
        %v1037 = vpop.permute.xlu0 %1036
        %1038 = vrot.lane.b32.xlu0 %v1007, 110
        %v1039 = vpop.permute.xlu0 %1038
        %1040 = vrot.lane.b32.xlu0 %v1008, 110
        %v1041 = vpop.permute.xlu0 %1040
        %1042 = vrot.lane.b32.xlu0 %v1009, 110
        %v1043 = vpop.permute.xlu0 %1042
        %1044 = vrot.lane.b32.xlu0 %v1010, 110
        %v1045 = vpop.permute.xlu0 %1044
        %1046 = vrot.lane.b32.xlu0 %v1011, 110
        %v1047 = vpop.permute.xlu0 %1046
        %vm1048 = vcmask 900096
        %v1049 = vsel %vm1048, %v1025, %v1027
        %v1050 = vsel %vm1048, %v1027, %v1029
        %v1051 = vsel %vm1048, %v1031, %v1033
        %v1052 = vsel %vm1048, %v1033, %v1035
        %v1053 = vsel %vm1048, %v1037, %v1039
        %v1054 = vsel %vm1048, %v1039, %v1041
        %v1055 = vsel %vm1048, %v1043, %v1045
        %v1056 = vsel %vm1048, %v1045, %v1047
        %v1069 = vadd.f32 %v939, %v1025
        %v1070 = vadd.f32 %v940, %v1049
        %v1071 = vadd.f32 %v941, %v1050
        %v1072 = vadd.f32 %v942, %v1031
        %v1073 = vadd.f32 %v943, %v1051
        %v1074 = vadd.f32 %v944, %v1052
        %v1075 = vadd.f32 %v945, %v1037
        %v1076 = vadd.f32 %v946, %v1053
        %v1077 = vadd.f32 %v947, %v1054
        %v1078 = vadd.f32 %v948, %v1043
        %v1079 = vadd.f32 %v949, %v1055
        %v1080 = vadd.f32 %v950, %v1056
        %1081 = vset.pattern.permute.xlu0 6
        %1082 = vperm.xlu0 %1081, %v458
        %v1083 = vpop.permute.xlu0 %1082
        %1085 = vset.pattern.permute.xlu0 6
        %1086 = vperm.xlu0 %1085, %v459
        %v1087 = vpop.permute.xlu0 %1086
        %1089 = vset.pattern.permute.xlu0 6
        %1090 = vperm.xlu0 %1089, %v460
        %v1091 = vpop.permute.xlu0 %1090
        %1093 = vset.pattern.permute.xlu0 6
        %1094 = vperm.xlu0 %1093, %v461
        %v1095 = vpop.permute.xlu0 %1094
        %v1097 = vmul.f32 %v951, %v1083
        %v1098 = vmul.f32 %v952, %v1083
        %v1099 = vmul.f32 %v953, %v1083
        %v1100 = vmul.f32 %v954, %v1087
        %v1101 = vmul.f32 %v955, %v1087
        %v1102 = vmul.f32 %v956, %v1087
        %v1103 = vmul.f32 %v957, %v1091
        %v1104 = vmul.f32 %v958, %v1091
        %v1105 = vmul.f32 %v959, %v1091
        %v1106 = vmul.f32 %v960, %v1095
        %v1107 = vmul.f32 %v961, %v1095
        %v1108 = vmul.f32 %v962, %v1095
        %1109 = vrot.lane.b32.xlu0 %v450, 15
        %v1110 = vpop.permute.xlu0 %1109
        %1111 = vrot.lane.b32.xlu0 %v451, 15
        %v1112 = vpop.permute.xlu0 %1111
        %vm1113 = vcmask 121856
        %v1114 = vsel %vm1113, %v1110, %v1112
        %v1118 = vmul.f32 %v1097, %v1110
        %v1119 = vmul.f32 %v1098, %v1114
        %v1120 = vmul.f32 %v1099, %v1112
        %v1121 = vmul.f32 %v1100, %v1110
        %v1122 = vmul.f32 %v1101, %v1114
        %v1123 = vmul.f32 %v1102, %v1112
        %v1124 = vmul.f32 %v1103, %v1110
        %v1125 = vmul.f32 %v1104, %v1114
        %v1126 = vmul.f32 %v1105, %v1112
        %v1127 = vmul.f32 %v1106, %v1110
        %v1128 = vmul.f32 %v1107, %v1114
        %v1129 = vmul.f32 %v1108, %v1112
        %1142 = vrot.lane.b32.xlu0 %v1118, 96
        %v1143 = vpop.permute.xlu0 %1142
        %1144 = vrot.lane.b32.xlu0 %v1119, 96
        %v1145 = vpop.permute.xlu0 %1144
        %1146 = vrot.lane.b32.xlu0 %v1120, 96
        %v1147 = vpop.permute.xlu0 %1146
        %1148 = vrot.lane.b32.xlu0 %v1121, 96
        %v1149 = vpop.permute.xlu0 %1148
        %1150 = vrot.lane.b32.xlu0 %v1122, 96
        %v1151 = vpop.permute.xlu0 %1150
        %1152 = vrot.lane.b32.xlu0 %v1123, 96
        %v1153 = vpop.permute.xlu0 %1152
        %1154 = vrot.lane.b32.xlu0 %v1124, 96
        %v1155 = vpop.permute.xlu0 %1154
        %1156 = vrot.lane.b32.xlu0 %v1125, 96
        %v1157 = vpop.permute.xlu0 %1156
        %1158 = vrot.lane.b32.xlu0 %v1126, 96
        %v1159 = vpop.permute.xlu0 %1158
        %1160 = vrot.lane.b32.xlu0 %v1127, 96
        %v1161 = vpop.permute.xlu0 %1160
        %1162 = vrot.lane.b32.xlu0 %v1128, 96
        %v1163 = vpop.permute.xlu0 %1162
        %1164 = vrot.lane.b32.xlu0 %v1129, 96
        %v1165 = vpop.permute.xlu0 %1164
        %vm1166 = vcmask 785408
        %v1167 = vsel %vm1166, %v1143, %v1145
        %v1168 = vsel %vm1166, %v1145, %v1147
        %v1169 = vsel %vm1166, %v1149, %v1151
        %v1170 = vsel %vm1166, %v1151, %v1153
        %v1171 = vsel %vm1166, %v1155, %v1157
        %v1172 = vsel %vm1166, %v1157, %v1159
        %v1173 = vsel %vm1166, %v1161, %v1163
        %v1174 = vsel %vm1166, %v1163, %v1165
        %v1187 = vadd.f32 %v1069, %v1143
        %v1188 = vadd.f32 %v1070, %v1167
        %v1189 = vadd.f32 %v1071, %v1168
        %v1190 = vadd.f32 %v1072, %v1149
        %v1191 = vadd.f32 %v1073, %v1169
        %v1192 = vadd.f32 %v1074, %v1170
        %v1193 = vadd.f32 %v1075, %v1155
        %v1194 = vadd.f32 %v1076, %v1171
        %v1195 = vadd.f32 %v1077, %v1172
        %v1196 = vadd.f32 %v1078, %v1161
        %v1197 = vadd.f32 %v1079, %v1173
        %v1198 = vadd.f32 %v1080, %v1174
        %1199 = vset.pattern.permute.xlu0 7
        %1200 = vperm.xlu0 %1199, %v458
        %v1201 = vpop.permute.xlu0 %1200
        %1203 = vset.pattern.permute.xlu0 7
        %1204 = vperm.xlu0 %1203, %v459
        %v1205 = vpop.permute.xlu0 %1204
        %1207 = vset.pattern.permute.xlu0 7
        %1208 = vperm.xlu0 %1207, %v460
        %v1209 = vpop.permute.xlu0 %1208
        %1211 = vset.pattern.permute.xlu0 7
        %1212 = vperm.xlu0 %1211, %v461
        %v1213 = vpop.permute.xlu0 %1212
        %v1215 = vmul.f32 %v951, %v1201
        %v1216 = vmul.f32 %v952, %v1201
        %v1217 = vmul.f32 %v953, %v1201
        %v1218 = vmul.f32 %v954, %v1205
        %v1219 = vmul.f32 %v955, %v1205
        %v1220 = vmul.f32 %v956, %v1205
        %v1221 = vmul.f32 %v957, %v1209
        %v1222 = vmul.f32 %v958, %v1209
        %v1223 = vmul.f32 %v959, %v1209
        %v1224 = vmul.f32 %v960, %v1213
        %v1225 = vmul.f32 %v961, %v1213
        %v1226 = vmul.f32 %v962, %v1213
        %1239 = vrot.lane.b32.xlu0 %v1215, 95
        %v1240 = vpop.permute.xlu0 %1239
        %1241 = vrot.lane.b32.xlu0 %v1216, 95
        %v1242 = vpop.permute.xlu0 %1241
        %1243 = vrot.lane.b32.xlu0 %v1217, 95
        %v1244 = vpop.permute.xlu0 %1243
        %1245 = vrot.lane.b32.xlu0 %v1218, 95
        %v1246 = vpop.permute.xlu0 %1245
        %1247 = vrot.lane.b32.xlu0 %v1219, 95
        %v1248 = vpop.permute.xlu0 %1247
        %1249 = vrot.lane.b32.xlu0 %v1220, 95
        %v1250 = vpop.permute.xlu0 %1249
        %1251 = vrot.lane.b32.xlu0 %v1221, 95
        %v1252 = vpop.permute.xlu0 %1251
        %1253 = vrot.lane.b32.xlu0 %v1222, 95
        %v1254 = vpop.permute.xlu0 %1253
        %1255 = vrot.lane.b32.xlu0 %v1223, 95
        %v1256 = vpop.permute.xlu0 %1255
        %1257 = vrot.lane.b32.xlu0 %v1224, 95
        %v1258 = vpop.permute.xlu0 %1257
        %1259 = vrot.lane.b32.xlu0 %v1225, 95
        %v1260 = vpop.permute.xlu0 %1259
        %1261 = vrot.lane.b32.xlu0 %v1226, 95
        %v1262 = vpop.permute.xlu0 %1261
        %vm1263 = vcmask 777216
        %v1264 = vsel %vm1263, %v1240, %v1242
        %v1265 = vsel %vm1263, %v1242, %v1244
        %v1266 = vsel %vm1263, %v1246, %v1248
        %v1267 = vsel %vm1263, %v1248, %v1250
        %v1268 = vsel %vm1263, %v1252, %v1254
        %v1269 = vsel %vm1263, %v1254, %v1256
        %v1270 = vsel %vm1263, %v1258, %v1260
        %v1271 = vsel %vm1263, %v1260, %v1262
        %v1284 = vadd.f32 %v1187, %v1240
        %v1285 = vadd.f32 %v1188, %v1264
        %v1286 = vadd.f32 %v1189, %v1265
        %v1287 = vadd.f32 %v1190, %v1246
        %v1288 = vadd.f32 %v1191, %v1266
        %v1289 = vadd.f32 %v1192, %v1267
        %v1290 = vadd.f32 %v1193, %v1252
        %v1291 = vadd.f32 %v1194, %v1268
        %v1292 = vadd.f32 %v1195, %v1269
        %v1293 = vadd.f32 %v1196, %v1258
        %v1294 = vadd.f32 %v1197, %v1270
        %v1295 = vadd.f32 %v1198, %v1271
        %1296 = vset.pattern.permute.xlu0 8
        %1297 = vperm.xlu0 %1296, %v458
        %v1298 = vpop.permute.xlu0 %1297
        %1300 = vset.pattern.permute.xlu0 8
        %1301 = vperm.xlu0 %1300, %v459
        %v1302 = vpop.permute.xlu0 %1301
        %1304 = vset.pattern.permute.xlu0 8
        %1305 = vperm.xlu0 %1304, %v460
        %v1306 = vpop.permute.xlu0 %1305
        %1308 = vset.pattern.permute.xlu0 8
        %1309 = vperm.xlu0 %1308, %v461
        %v1310 = vpop.permute.xlu0 %1309
        %v1312 = vmul.f32 %v951, %v1298
        %v1313 = vmul.f32 %v952, %v1298
        %v1314 = vmul.f32 %v953, %v1298
        %v1315 = vmul.f32 %v954, %v1302
        %v1316 = vmul.f32 %v955, %v1302
        %v1317 = vmul.f32 %v956, %v1302
        %v1318 = vmul.f32 %v957, %v1306
        %v1319 = vmul.f32 %v958, %v1306
        %v1320 = vmul.f32 %v959, %v1306
        %v1321 = vmul.f32 %v960, %v1310
        %v1322 = vmul.f32 %v961, %v1310
        %v1323 = vmul.f32 %v962, %v1310
        %1324 = vrot.lane.b32.xlu0 %v456, 17
        %v1325 = vpop.permute.xlu0 %1324
        %1326 = vrot.lane.b32.xlu0 %v457, 17
        %v1327 = vpop.permute.xlu0 %1326
        %vm1328 = vcmask 138240
        %v1329 = vsel %vm1328, %v1325, %v1327
        %v1333 = vmul.f32 %v1312, %v1325
        %v1334 = vmul.f32 %v1313, %v1329
        %v1335 = vmul.f32 %v1314, %v1327
        %v1336 = vmul.f32 %v1315, %v1325
        %v1337 = vmul.f32 %v1316, %v1329
        %v1338 = vmul.f32 %v1317, %v1327
        %v1339 = vmul.f32 %v1318, %v1325
        %v1340 = vmul.f32 %v1319, %v1329
        %v1341 = vmul.f32 %v1320, %v1327
        %v1342 = vmul.f32 %v1321, %v1325
        %v1343 = vmul.f32 %v1322, %v1329
        %v1344 = vmul.f32 %v1323, %v1327
        %1357 = vrot.lane.b32.xlu0 %v1333, 94
        %v1358 = vpop.permute.xlu0 %1357
        %1359 = vrot.lane.b32.xlu0 %v1334, 94
        %v1360 = vpop.permute.xlu0 %1359
        %1361 = vrot.lane.b32.xlu0 %v1335, 94
        %v1362 = vpop.permute.xlu0 %1361
        %1363 = vrot.lane.b32.xlu0 %v1336, 94
        %v1364 = vpop.permute.xlu0 %1363
        %1365 = vrot.lane.b32.xlu0 %v1337, 94
        %v1366 = vpop.permute.xlu0 %1365
        %1367 = vrot.lane.b32.xlu0 %v1338, 94
        %v1368 = vpop.permute.xlu0 %1367
        %1369 = vrot.lane.b32.xlu0 %v1339, 94
        %v1370 = vpop.permute.xlu0 %1369
        %1371 = vrot.lane.b32.xlu0 %v1340, 94
        %v1372 = vpop.permute.xlu0 %1371
        %1373 = vrot.lane.b32.xlu0 %v1341, 94
        %v1374 = vpop.permute.xlu0 %1373
        %1375 = vrot.lane.b32.xlu0 %v1342, 94
        %v1376 = vpop.permute.xlu0 %1375
        %1377 = vrot.lane.b32.xlu0 %v1343, 94
        %v1378 = vpop.permute.xlu0 %1377
        %1379 = vrot.lane.b32.xlu0 %v1344, 94
        %v1380 = vpop.permute.xlu0 %1379
        %vm1381 = vcmask 769024
        %v1382 = vsel %vm1381, %v1358, %v1360
        %v1383 = vsel %vm1381, %v1360, %v1362
        %v1384 = vsel %vm1381, %v1364, %v1366
        %v1385 = vsel %vm1381, %v1366, %v1368
        %v1386 = vsel %vm1381, %v1370, %v1372
        %v1387 = vsel %vm1381, %v1372, %v1374
        %v1388 = vsel %vm1381, %v1376, %v1378
        %v1389 = vsel %vm1381, %v1378, %v1380
        %v1402 = vadd.f32 %v1284, %v1358
        %v1403 = vadd.f32 %v1285, %v1382
        %v1404 = vadd.f32 %v1286, %v1383
        %v1405 = vadd.f32 %v1287, %v1364
        %v1406 = vadd.f32 %v1288, %v1384
        %v1407 = vadd.f32 %v1289, %v1385
        %v1408 = vadd.f32 %v1290, %v1370
        %v1409 = vadd.f32 %v1291, %v1386
        %v1410 = vadd.f32 %v1292, %v1387
        %v1411 = vadd.f32 %v1293, %v1376
        %v1412 = vadd.f32 %v1294, %v1388
        %v1413 = vadd.f32 %v1295, %v1389
        %v1414 = vld [vmem:[%s4] sm:$0xff]
        %v1415 = vld [vmem:[%s4 + $0x8] sm:$0xff]
        %v1416 = vld [vmem:[%s4 + $0x10] sm:$0xff]
        %v1417 = vld [vmem:[%s4 + $0x18] sm:$0xff]
        %1419 = vset.pattern.permute.xlu0 0
        %1420 = vperm.xlu0 %1419, %v1414
        %v1421 = vpop.permute.xlu0 %1420
        %1424 = vset.pattern.permute.xlu0 0
        %1425 = vperm.xlu0 %1424, %v1415
        %v1426 = vpop.permute.xlu0 %1425
        %1429 = vset.pattern.permute.xlu0 0
        %1430 = vperm.xlu0 %1429, %v1416
        %v1431 = vpop.permute.xlu0 %1430
        %1434 = vset.pattern.permute.xlu0 0
        %1435 = vperm.xlu0 %1434, %v1417
        %v1436 = vpop.permute.xlu0 %1435
        %v1438 = vadd.f32 %v1402, %v1421
        %v1439 = vadd.f32 %v1403, %v1421
        %v1440 = vadd.f32 %v1404, %v1421
        %v1441 = vadd.f32 %v1405, %v1426
        %v1442 = vadd.f32 %v1406, %v1426
        %v1443 = vadd.f32 %v1407, %v1426
        %v1444 = vadd.f32 %v1408, %v1431
        %v1445 = vadd.f32 %v1409, %v1431
        %v1446 = vadd.f32 %v1410, %v1431
        %v1447 = vadd.f32 %v1411, %v1436
        %v1448 = vadd.f32 %v1412, %v1436
        %v1449 = vadd.f32 %v1413, %v1436
        %v1450 = vmax.f32 %v1438, 0.0
        %v1451 = vmax.f32 %v1439, 0.0
        %v1452 = vmax.f32 %v1440, 0.0
        %v1453 = vmax.f32 %v1441, 0.0
        %v1454 = vmax.f32 %v1442, 0.0
        %v1455 = vmax.f32 %v1443, 0.0
        %v1456 = vmax.f32 %v1444, 0.0
        %v1457 = vmax.f32 %v1445, 0.0
        %v1458 = vmax.f32 %v1446, 0.0
        %v1459 = vmax.f32 %v1447, 0.0
        %v1460 = vmax.f32 %v1448, 0.0
        %v1461 = vmax.f32 %v1449, 0.0
        %v1462 = vmin.f32 %v1450, 6.0
        %v1463 = vmin.f32 %v1451, 6.0
        %v1464 = vmin.f32 %v1452, 6.0
        %v1465 = vmin.f32 %v1453, 6.0
        %v1466 = vmin.f32 %v1454, 6.0
        %v1467 = vmin.f32 %v1455, 6.0
        %v1468 = vmin.f32 %v1456, 6.0
        %v1469 = vmin.f32 %v1457, 6.0
        %v1470 = vmin.f32 %v1458, 6.0
        %v1471 = vmin.f32 %v1459, 6.0
        %v1472 = vmin.f32 %v1460, 6.0
        %v1473 = vmin.f32 %v1461, 6.0
        %v1474 = vld [vmem:[%s5] sm:$0xf]
        %v1475 = vpack.c.bf16 %v1465, %v1462
        %v1476 = vpack.c.bf16 %v1466, %v1463
        %v1477 = vpack.c.bf16 %v1467, %v1464
        %v1478 = vpack.c.bf16 %v1471, %v1468
        %v1479 = vpack.c.bf16 %v1472, %v1469
        %v1480 = vpack.c.bf16 %v1473, %v1470
        %v1481 = vld [vmem:[%s6] sm:$0xff]
        %1483 = vset.pattern.permute.xlu0 0
        %1484 = vperm.xlu0 %1483, %v1481
        %v1485 = vpop.permute.xlu0 %1484
        %1493 = vrot.lane.b32.xlu0 %v1475, 17
        %v1494 = vpop.permute.xlu0 %1493
        %1495 = vrot.lane.b32.xlu0 %v1476, 17
        %v1496 = vpop.permute.xlu0 %1495
        %1497 = vrot.lane.b32.xlu0 %v1477, 17
        %v1498 = vpop.permute.xlu0 %1497
        %1499 = vrot.lane.b32.xlu0 %v1478, 17
        %v1500 = vpop.permute.xlu0 %1499
        %1501 = vrot.lane.b32.xlu0 %v1479, 17
        %v1502 = vpop.permute.xlu0 %1501
        %1503 = vrot.lane.b32.xlu0 %v1480, 17
        %v1504 = vpop.permute.xlu0 %1503
        %vm1505 = vcmask 138240
        %v1506 = vsel %vm1505, %v1494, %v1496
        %v1507 = vsel %vm1505, %v1496, %v1498
        %v1508 = vsel %vm1505, %v1500, %v1502
        %v1509 = vsel %vm1505, %v1502, %v1504
        %vm1514 = vcmask 261120
        %v1516 = vsel %vm1514, %v1474, 0
        %1518 = vmatprep.subr.bf16.mxu0 %v1507
        %1519 = vmatpush1.bf16.msra.mxu0 %v1506
        %1520 = vmatprep.subr.bf16.mxu0 %v1509
        %1521 = vmatpush1.bf16.msra.mxu0 %v1508
        %1522 = vmatprep.subr.bf16.mxu0 0
        %1523 = vmatpush1.bf16.msra.mxu0 0
        %1524 = vmatprep.subr.bf16.mxu0 0
        %1525 = vmatpush1.bf16.msra.mxu0 0
        %1526 = vmatprep.subr.bf16.mxu0 0
        %1527 = vmatpush1.bf16.msra.mxu0 0
        %1528 = vmatprep.subr.bf16.mxu0 0
        %1529 = vmatpush1.bf16.msra.mxu0 0
        %1530 = vmatprep.subr.bf16.mxu0 0
        %1531 = vmatpush1.bf16.msra.mxu0 0
        %1532 = vmatprep.subr.bf16.mxu0 0
        %1533 = vmatpush1.bf16.msra.mxu0 0
        %1534 = vmatprep.subr.bf16.mxu0 0
        %1535 = vmatpush1.bf16.msra.mxu0 0
        %1536 = vmatprep.subr.bf16.mxu0 0
        %1537 = vmatpush1.bf16.msra.mxu0 0
        %1538 = vmatprep.subr.bf16.mxu0 0
        %1539 = vmatpush1.bf16.msra.mxu0 0
        %1540 = vmatprep.subr.bf16.mxu0 0
        %1541 = vmatpush1.bf16.msra.mxu0 0
        %1542 = vmatprep.subr.bf16.mxu0 0
        %1543 = vmatpush1.bf16.msra.mxu0 0
        %1544 = vmatprep.subr.bf16.mxu0 0
        %1545 = vmatpush1.bf16.msra.mxu0 0
        %1546 = vmatprep.subr.bf16.mxu0 0
        %1547 = vmatpush1.bf16.msra.mxu0 0
        %1548 = vmatprep.subr.bf16.mxu0 0
        %1549 = vmatpush1.bf16.msra.mxu0 0
        %1550 = vmatprep.mubr.bf16.mxu0 0
        %1551 = vmatmul.mubr.bf16.gmra.mrb[0].mxu0 %v1516
        %v1552 = vpop.f32.mrb[0].mxu0
        %v1553 = vadd.f32 %v1485, %v1552
        %v1554 = vpop.f32.mrb[0].mxu0
        %v1555 = vadd.f32 %v1485, %v1554
        %v1556 = vpop.f32.mrb[0].mxu0
        %v1557 = vpop.f32.mrb[0].mxu0
        %1558 = vdwg.mxu0
        %v1559 = vadd.f32 %v1553, %v278
        %v1560 = vadd.f32 %v1555, %v279
        %1561 = vst [vmem:[%s271] sm:$0xff] %v1559
        %1562 = vst [vmem:[%s271 + $0x8] sm:$0xff] %v1560
        %s1563 = sand.u32 %s181, 1
        %s1564 = scalar_lea.sflag [#allocation4], %s1563
        %s1565 = sand.u32 %s181, 1
        %s1566 = smul.addr %s1565, 16
        %s1567 = scalar_lea.vmem [#allocation3], %s1566
        // Predicated region
        $region49: #{tpu_custom_call.1} parent=47 // pred_check
          %p1568 = pneg %p191
        $region50: #{tpu_custom_call.1} parent=47 // pred_check_branch
          %1570 = sbr.rel (%p1568) target = $region52
        $region51: #{tpu_custom_call.1} parent=47 // pred_region
          %s1572 = ssub.s32 256, 256
          %1573 = vsyncadd %s1564, %s1572
          %s1574 = smul.addr %s21, 2
          %s1575 = smul.addr %s1574, 128
          %s1576 = scalar_lea.hbm %s7, %s1575
          %s1578 = sshll.u32 %s1567, 4
          %s1579 = int_to_ptr.vmem [resolvable:$true] %s1578
          %1581 = dma.vmem_to_hbm [thread:$0]  %s1579, 256, %s1576, %s1564
        $region52: #{tpu_custom_call.1} parent=47 // pred_fallthru
          _
      $region48: #{tpu_custom_call.1} parent=5 // pred_fallthru
        _
      %p1582 = scmp.le.s32.totalorder 2, %s16
      // Predicated region
      $region53: #{tpu_custom_call.1} parent=5 // pred_check
        %p1583 = pneg %p1582
      $region54: #{tpu_custom_call.1} parent=5 // pred_check_branch
        %1585 = sbr.rel (%p1583) target = $region56
      $region55: #{tpu_custom_call.1} parent=5 // pred_region
        %s1586 = ssub.s32 %s16, 2
        // Predicated region
        $region57: #{tpu_custom_call.1} parent=55 // pred_check
          %p1587 = pneg %p197
        $region58: #{tpu_custom_call.1} parent=55 // pred_check_branch
          %1589 = sbr.rel (%p1587) target = $region60
        $region59: #{tpu_custom_call.1} parent=55 // pred_region
          %s1590 = sand.u32 %s182, 1
          %s1591 = scalar_lea.sflag [#allocation4], %s1590
          %s1592 = sand.u32 %s182, 1
          %s1593 = smul.addr %s1592, 16
          %s1594 = scalar_lea.vmem [#allocation3], %s1593
          %1595 = dma.done %s1591, 256
        $region60: #{tpu_custom_call.1} parent=55 // pred_fallthru
          _
      $region56: #{tpu_custom_call.1} parent=5 // pred_fallthru
        _
    $region6: #{tpu_custom_call.1} parent=1 // loop_footer
      %s20 = sadd.s32 1, %s16
    $region7: #{tpu_custom_call.1} parent=1 // loop_footer_branch
      %15 = sbr.rel target = $region3
    $region8: #{tpu_custom_call.1} parent=1 // loop_exit
      _
    %1596 = vsyncpa [#allocation4], 1
    %s1597 = scalar_lea.sflag [#allocation4], 1
    %1598 = vsyncpa %s1597, 1

</llo_original>
